<compile_context>
chip_gen: v7x
topology: tpu7x:2x2x1
jax: 0.10.0
libtpu: 0.0.40
codegen_flags: <defaults>
</compile_context>

<pallas_src>
import functools

import jax
import jax.numpy as jnp
from jax.experimental import pallas as pl
from jax.experimental.pallas import tpu as pltpu

F_G, F_L1, F_INT1 = 1280, 112, 56
F_L2, F_INT2 = 192, 96
F_CAT = F_G + F_L1 + F_L2            # 1584 — packed [features | f4 | f6] channel layout
NUM_CLASSES = 1
BN_EPS = 1e-5
STEM_K = 16                          # im2col K padded 9 -> 16 (sublane friendly)
POOL = 4                             # 4x4 average downsample of the stem output
# merged gate/head weight layout: [ag1 (56) | ag2 (96) | cf c1 c2 (3) | zero pad] -> 256 lanes
# (256 = two 128-wide MXU tiles on v5e = one 256-wide tile on v6e/v7x — no waste either way)
N_COMB = 256
COL_CF = F_INT1 + F_INT2             # 152: fc . features   (per pixel)
COL_C1 = COL_CF + 1                  # 153: fc . f4          (per pixel)
COL_C2 = COL_CF + 2                  # 154: fc . f6          (per pixel)
BT_TARGET = 16                       # M = Bt*16 = 256 on v6e/v7x; use 8 on v5e (M=128).
                                     # Keep B//Bt >= 2 on v7x so both TensorCores get steps.


# ----------------------------- fused Pallas kernel -----------------------------

def fused_kernel(xin_ref, w_pre_ref, b_pre_ref, w_comb_ref, b_comb_ref,
                 wp1_ref, bp1_ref, wp2_ref, bp2_ref, fc_b_ref, o_ref, *, bt, hwd):
    """Bt images per grid step: folded stem+pool+proj -> merged gates+fc -> pooled head."""
    m = bt * hwd
    x = xin_ref[...].reshape(m, STEM_K)                                   # (M, 16) bf16

    # folded stem-conv + 4x4-pool + fused 1x1 projections + ReLU: ONE (M,16)x(16,1584) matmul
    proj = jnp.dot(x, w_pre_ref[...], preferred_element_type=jnp.float32) + b_pre_ref[...]
    proj = jnp.maximum(proj, 0.0)                                         # (M, 1584) f32

    # merged attention-gate (Wg|Wx, BN folded) + fc columns: ONE (M,1584)x(1584,256) bf16 matmul
    gcomb = jnp.dot(proj.astype(jnp.bfloat16), w_comb_ref[...],
                    preferred_element_type=jnp.float32)                   # (M, 256) f32

    # gates: ReLU on the gate lanes, psi = sigmoid(masked lane reduction) — no N=1 MXU dot
    g_relu = jnp.maximum(gcomb + b_comb_ref[...], 0.0)
    z1 = jnp.sum(g_relu * wp1_ref[...], axis=-1, keepdims=True) + bp1_ref[...]
    z2 = jnp.sum(g_relu * wp2_ref[...], axis=-1, keepdims=True) + bp2_ref[...]
    psi1 = 1.0 / (1.0 + jnp.exp(-z1))                                     # (M, 1)
    psi2 = 1.0 / (1.0 + jnp.exp(-z2))

    # head: out[b] = mean_s( cf[s] + psi1[s]*c1[s] + psi2[s]*c2[s] ) + fc_b, where cf/c1/c2 are
    # the three fc columns of gcomb (fc weights are zero outside their concat segment and psi
    # is a per-pixel scalar, so gating commutes with the fc dot product).
    lane = jax.lax.broadcasted_iota(jnp.int32, (1, N_COMB), 1)
    sel = ((lane == COL_CF).astype(jnp.float32)
           + psi1 * (lane == COL_C1).astype(jnp.float32)
           + psi2 * (lane == COL_C2).astype(jnp.float32))                 # (M, 256)
    weighted = gcomb * sel                                                # (M, 256)
    per_img = jnp.sum(weighted.reshape(bt, hwd, N_COMB), axis=1)          # (Bt, 256)
    out = jnp.sum(per_img, axis=-1, keepdims=True) * (1.0 / hwd) + fc_b_ref[...]
    o_ref[...] = out.astype(o_ref.dtype)                                  # (Bt, 1)


def _full_spec(arr):
    nd = arr.ndim
    return pl.BlockSpec(arr.shape, lambda b, n=nd: (0,) * n)


# ----------------------------- parameters -----------------------------

def _fold_bn(w, b, gamma, beta, mean, var, eps=BN_EPS):
    """Fold eval-mode BatchNorm2d into the preceding 1x1 conv (per output channel)."""
    scale = gamma / jnp.sqrt(var + eps)
    return w * scale[None, :], (b - mean) * scale + beta


def init_params(key):
    ks = iter(jax.random.split(key, 40))

    def w(shape, fan_in):
        return jax.random.normal(next(ks), shape, jnp.float32) / jnp.sqrt(float(fan_in))

    def bn(n):
        gamma = 1.0 + 0.1 * jax.random.normal(next(ks), (n,), jnp.float32)
        beta = 0.1 * jax.random.normal(next(ks), (n,), jnp.float32)
        return gamma, beta, jnp.zeros((n,), jnp.float32), jnp.ones((n,), jnp.float32)

    p = {}
    # modified EfficientNet stem: Conv2d(1, 32, kernel_size=3, stride=2, padding=1, bias=False)
    p["stem_w"] = w((9, 32), 9)                  # (ky, kx, cin)-major im2col layout

    # TODO(synk): the pretrained EfficientNet-B0 MBConv/SE/depthwise stacks have no compact
    # Pallas translation; stand-in = one fused 1x1-conv+ReLU projection producing the exact
    # channel counts the gates / head expect (1280 | 112 | 192), wiring preserved.
    p["pf_w"], p["pf_b"] = w((32, F_G), 32), jnp.zeros((F_G,), jnp.float32)
    p["p4_w"], p["p4_b"] = w((32, F_L1), 32), jnp.zeros((F_L1,), jnp.float32)
    p["p6_w"], p["p6_b"] = w((32, F_L2), 32), jnp.zeros((F_L2,), jnp.float32)

    def attention_gate(F_g, F_l, F_int):
        return dict(
            wg=w((F_g, F_int), F_g),
            bg=0.01 * jax.random.normal(next(ks), (F_int,), jnp.float32), bn_g=bn(F_int),
            wx=w((F_l, F_int), F_l),
            bx=0.01 * jax.random.normal(next(ks), (F_int,), jnp.float32), bn_x=bn(F_int),
            wp=w((F_int, 1), F_int),
            bp=0.01 * jax.random.normal(next(ks), (1,), jnp.float32), bn_p=bn(1))

    p["ag1"] = attention_gate(F_G, F_L1, F_INT1)   # AttentionGate(1280, 112, 56)
    p["ag2"] = attention_gate(F_G, F_L2, F_INT2)   # AttentionGate(1280, 192, 96)

    p["fc_w"] = w((F_CAT, NUM_CLASSES), F_CAT)     # Linear(1280 + 112 + 192, num_classes)
    p["fc_b"] = jnp.zeros((NUM_CLASSES,), jnp.float32)
    return p


def pack_params(p):
    """Fold BatchNorms, fold the stem conv into the fused projection, and merge both gates plus
    the fc segments into one wide weight.  MXU operands are stored bf16 (f32 accumulation)."""
    pk = {}
    # stem (im2col K padded to 16) folded into the fused [features|f4|f6] 1x1 projection — valid
    # because there is no nonlinearity between the stem conv, the 4x4 avg-pool and the projection.
    stem_w = jnp.zeros((STEM_K, 32), jnp.float32).at[:p["stem_w"].shape[0]].set(p["stem_w"])
    proj_w = jnp.concatenate([p["pf_w"], p["p4_w"], p["p6_w"]], axis=1)       # (32, 1584)
    pk["w_pre"] = (stem_w @ proj_w).astype(jnp.bfloat16)                      # (16, 1584)
    pk["b_pre"] = jnp.concatenate([p["pf_b"], p["p4_b"], p["p6_b"]])[None, :]

    def gate(q, F_l, F_int, x_off):
        wg, bg = _fold_bn(q["wg"], q["bg"], *q["bn_g"])
        wx, bx = _fold_bn(q["wx"], q["bx"], *q["bn_x"])
        wp, bp = _fold_bn(q["wp"], q["bp"], *q["bn_p"])
        w_full = (jnp.zeros((F_CAT, F_int), jnp.float32)
                  .at[:F_G].set(wg)
                  .at[x_off:x_off + F_l].set(wx))
        return w_full, bg + bx, wp[:, 0], bp

    ag1_w, ag1_b, ag1_wp, ag1_bp = gate(p["ag1"], F_L1, F_INT1, F_G)
    ag2_w, ag2_b, ag2_wp, ag2_bp = gate(p["ag2"], F_L2, F_INT2, F_G + F_L1)

    fc = p["fc_w"][:, 0]
    col_cf = jnp.zeros((F_CAT,), jnp.float32).at[:F_G].set(fc[:F_G])
    col_c1 = jnp.zeros((F_CAT,), jnp.float32).at[F_G:F_G + F_L1].set(fc[F_G:F_G + F_L1])
    col_c2 = jnp.zeros((F_CAT,), jnp.float32).at[F_G + F_L1:].set(fc[F_G + F_L1:])

    w_comb = (jnp.zeros((F_CAT, N_COMB), jnp.float32)
              .at[:, :F_INT1].set(ag1_w)
              .at[:, F_INT1:F_INT1 + F_INT2].set(ag2_w)
              .at[:, COL_CF].set(col_cf)
              .at[:, COL_C1].set(col_c1)
              .at[:, COL_C2].set(col_c2))
    pk["w_comb"] = w_comb.astype(jnp.bfloat16)
    pk["b_comb"] = (jnp.zeros((N_COMB,), jnp.float32)
                    .at[:F_INT1].set(ag1_b)
                    .at[F_INT1:F_INT1 + F_INT2].set(ag2_b))[None, :]
    pk["wp1"] = jnp.zeros((N_COMB,), jnp.float32).at[:F_INT1].set(ag1_wp)[None, :]
    pk["wp2"] = jnp.zeros((N_COMB,), jnp.float32).at[F_INT1:F_INT1 + F_INT2].set(ag2_wp)[None, :]
    pk["bp1"], pk["bp2"] = ag1_bp[None, :], ag2_bp[None, :]
    pk["fc_b"] = p["fc_b"][None, :]
    return pk


# ----------------------------- forward -----------------------------

def brain_focused_forward(x_nchw, pk, bt=BT_TARGET):
    B, Cin, Hi, Wi = x_nchw.shape
    Ho, Wo = Hi // 2, Wi // 2
    Hd, Wd = Ho // POOL, Wo // POOL
    HW_D = Hd * Wd
    assert 9 * Cin <= STEM_K and Ho % POOL == 0 and Wo % POOL == 0

    # im2col for the 3x3/stride-2/pad-1 stem conv (XLA glue), then average the PATCHES over each
    # 4x4 output block: pooling commutes with the bias-free stem conv and the 1x1 projection,
    # so the per-image kernel input shrinks from (Ho*Wo, 16) to (HW_D, 16) and no dense pooling
    # matrix ever enters VMEM.
    x = jnp.transpose(x_nchw, (0, 2, 3, 1)).astype(jnp.float32)               # NCHW -> NHWC
    xp = jnp.pad(x, ((0, 0), (1, 1), (1, 1), (0, 0)))
    cols = [xp[:, ky:ky + 2 * Ho:2, kx:kx + 2 * Wo:2, :]
            for ky in range(3) for kx in range(3)]
    patches = jnp.concatenate(cols, axis=-1)                                  # (B, Ho, Wo, 9*Cin)
    patches = jnp.pad(patches, ((0, 0), (0, 0), (0, 0), (0, STEM_K - 9 * Cin)))
    pooled = patches.reshape(B, Hd, POOL, Wd, POOL, STEM_K).mean(axis=(2, 4))
    pooled = pooled.reshape(B, HW_D, STEM_K).astype(jnp.bfloat16)

    # batch tiling: Bt images per grid step -> matmuls see M = Bt*HW_D rows.
    Bt = max(1, min(bt, B))
    if Bt < B and Bt % 8 != 0:
        Bt = min(B, ((Bt + 7) // 8) * 8)      # keep the output block sublane-aligned when grid>1
    Bp = ((B + Bt - 1) // Bt) * Bt
    if Bp != B:
        pooled = jnp.pad(pooled, ((0, Bp - B), (0, 0), (0, 0)))

    args = (pooled, pk["w_pre"], pk["b_pre"], pk["w_comb"], pk["b_comb"],
            pk["wp1"], pk["bp1"], pk["wp2"], pk["bp2"], pk["fc_b"])
    in_specs = [pl.BlockSpec((Bt, HW_D, STEM_K), lambda b: (b, 0, 0))]
    in_specs += [_full_spec(a) for a in args[1:]]

    out = pl.pallas_call(
        functools.partial(fused_kernel, bt=Bt, hwd=HW_D),
        out_shape=jax.ShapeDtypeStruct((Bp, NUM_CLASSES), jnp.float32),
        grid=(Bp // Bt,),
        in_specs=in_specs,
        out_specs=pl.BlockSpec((Bt, NUM_CLASSES), lambda b: (b, 0)),
        compiler_params=pltpu.CompilerParams(
            dimension_semantics=("parallel",)),   # batch grid shards across v7x's two TCs
    )(*args)
    return out[:B]


# ----------------------------- pure-JAX reference (validation only) -----------------------------

def reference_forward(x_nchw, p):
    B, Cin, Hi, Wi = x_nchw.shape
    Ho, Wo = Hi // 2, Wi // 2
    Hd, Wd = Ho // POOL, Wo // POOL
    x = jnp.transpose(x_nchw, (0, 2, 3, 1)).astype(jnp.float32)
    xp = jnp.pad(x, ((0, 0), (1, 1), (1, 1), (0, 0)))
    cols = [xp[:, ky:ky + 2 * Ho:2, kx:kx + 2 * Wo:2, :]
            for ky in range(3) for kx in range(3)]
    patches = jnp.concatenate(cols, axis=-1)
    stem = jnp.einsum("bhwk,kc->bhwc", patches, p["stem_w"])
    pooled = stem.reshape(B, Hd, POOL, Wd, POOL, 32).mean(axis=(2, 4))
    f = jnp.maximum(jnp.einsum("bhwc,cn->bhwn", pooled, p["pf_w"]) + p["pf_b"], 0.0)
    f4 = jnp.maximum(jnp.einsum("bhwc,cn->bhwn", pooled, p["p4_w"]) + p["p4_b"], 0.0)
    f6 = jnp.maximum(jnp.einsum("bhwc,cn->bhwn", pooled, p["p6_w"]) + p["p6_b"], 0.0)

    def bn(z, bnp):
        gamma, beta, mean, var = bnp
        return gamma * (z - mean) / jnp.sqrt(var + BN_EPS) + beta

    def gate(q, g, xl):
        g1 = bn(jnp.einsum("bhwc,cn->bhwn", g, q["wg"]) + q["bg"], q["bn_g"])
        x1 = bn(jnp.einsum("bhwc,cn->bhwn", xl, q["wx"]) + q["bx"], q["bn_x"])
        pre = jnp.maximum(g1 + x1, 0.0)
        psi = jax.nn.sigmoid(bn(jnp.einsum("bhwn,no->bhwo", pre, q["wp"]) + q["bp"], q["bn_p"]))
        return xl * psi

    att1 = gate(p["ag1"], f, f4)
    att2 = gate(p["ag2"], f, f6)
    pool = lambda t: t.mean(axis=(1, 2))
    cat = jnp.concatenate([pool(f), pool(att1), pool(att2)], axis=-1)
    return cat @ p["fc_w"] + p["fc_b"]


if __name__ == "__main__":
    key = jax.random.PRNGKey(0)
    pkey, xkey = jax.random.split(key)
    params = init_params(pkey)
    packed = pack_params(params)
    x = jax.random.normal(xkey, (2, 1, 32, 32), jnp.float32)   # NCHW, single-channel input
    y = jax.jit(brain_focused_forward)(x, packed)
    jax.block_until_ready(y)
    assert y.shape == (2, NUM_CLASSES)
    ref = reference_forward(x, params)
    err = float(jnp.max(jnp.abs(y - ref)))
    tol = 5e-2 * (1.0 + float(jnp.max(jnp.abs(ref))))
    assert err < tol, f"kernel/reference mismatch: {err} vs tol {tol}"
    print("KERNEL_OK")
</pallas_src>

<mosaic_0001>
module attributes {stable_mosaic.version = 11 : i64} {
  func.func @fused_kernel(%arg0: i32, %arg1: memref<2x16x16xbf16, #tpu.memory_space<vmem>>, %arg2: memref<16x1584xbf16, #tpu.memory_space<vmem>>, %arg3: memref<1x1584xf32, #tpu.memory_space<vmem>>, %arg4: memref<1584x256xbf16, #tpu.memory_space<vmem>>, %arg5: memref<1x256xf32, #tpu.memory_space<vmem>>, %arg6: memref<1x256xf32, #tpu.memory_space<vmem>>, %arg7: memref<1x1xf32, #tpu.memory_space<vmem>>, %arg8: memref<1x256xf32, #tpu.memory_space<vmem>>, %arg9: memref<1x1xf32, #tpu.memory_space<vmem>>, %arg10: memref<1x1xf32, #tpu.memory_space<vmem>>, %arg11: memref<2x1xf32, #tpu.memory_space<vmem>>) attributes {dimension_semantics = [#tpu.dimension_semantics<parallel>], iteration_bounds = array<i64: 1>, scalar_prefetch = 0 : i64, scratch_operands = 0 : i64, tpu.core_type = #tpu.core_type<tc>, window_params = [{transform_indices = @transform_0, window_bounds = array<i64: 2, 16, 16>}, {pipeline_mode = #tpu.pipeline_mode<synchronous>, transform_indices = @transform_1, window_bounds = array<i64: 16, 1584>}, {pipeline_mode = #tpu.pipeline_mode<synchronous>, transform_indices = @transform_2, window_bounds = array<i64: 1, 1584>}, {pipeline_mode = #tpu.pipeline_mode<synchronous>, transform_indices = @transform_3, window_bounds = array<i64: 1584, 256>}, {pipeline_mode = #tpu.pipeline_mode<synchronous>, transform_indices = @transform_4, window_bounds = array<i64: 1, 256>}, {pipeline_mode = #tpu.pipeline_mode<synchronous>, transform_indices = @transform_5, window_bounds = array<i64: 1, 256>}, {pipeline_mode = #tpu.pipeline_mode<synchronous>, transform_indices = @transform_6, window_bounds = array<i64: 1, 1>}, {pipeline_mode = #tpu.pipeline_mode<synchronous>, transform_indices = @transform_7, window_bounds = array<i64: 1, 256>}, {pipeline_mode = #tpu.pipeline_mode<synchronous>, transform_indices = @transform_8, window_bounds = array<i64: 1, 1>}, {pipeline_mode = #tpu.pipeline_mode<synchronous>, transform_indices = @transform_9, window_bounds = array<i64: 1, 1>}, {transform_indices = @transform_10, window_bounds = array<i64: 2, 1>}]} {
    %c0 = arith.constant 0 : index
    %c0_0 = arith.constant 0 : index
    %c0_1 = arith.constant 0 : index
    %0 = vector.load %arg1[%c0, %c0_0, %c0_1] : memref<2x16x16xbf16, #tpu.memory_space<vmem>>, vector<2x16x16xbf16>
    %1 = vector.shape_cast %0 : vector<2x16x16xbf16> to vector<32x16xbf16>
    %c0_2 = arith.constant 0 : index
    %c0_3 = arith.constant 0 : index
    %2 = vector.load %arg2[%c0_2, %c0_3] : memref<16x1584xbf16, #tpu.memory_space<vmem>>, vector<16x1584xbf16>
    %cst = arith.constant dense<0.000000e+00> : vector<32x1584xf32>
    %3 = tpu.matmul %1, %2, %cst {dimension_numbers = #tpu.dot_dimension_numbers<[1], [0], [0], [1], [0, 0, 1, 1], [], []>} : vector<32x16xbf16>, vector<16x1584xbf16>, vector<32x1584xf32> -> vector<32x1584xf32>
    %c0_4 = arith.constant 0 : index
    %c0_5 = arith.constant 0 : index
    %4 = vector.load %arg3[%c0_4, %c0_5] : memref<1x1584xf32, #tpu.memory_space<vmem>>, vector<1x1584xf32>
    %5 = vector.broadcast %4 : vector<1x1584xf32> to vector<32x1584xf32>
    %6 = arith.addf %3, %5 : vector<32x1584xf32>
    %cst_6 = arith.constant 0.000000e+00 : f32
    %7 = vector.broadcast %cst_6 : f32 to vector<32x1584xf32>
    %8 = arith.maximumf %6, %7 : vector<32x1584xf32>
    %9 = arith.truncf %8 : vector<32x1584xf32> to vector<32x1584xbf16>
    %c0_7 = arith.constant 0 : index
    %c0_8 = arith.constant 0 : index
    %10 = vector.load %arg4[%c0_7, %c0_8] : memref<1584x256xbf16, #tpu.memory_space<vmem>>, vector<1584x256xbf16>
    %cst_9 = arith.constant dense<0.000000e+00> : vector<32x256xf32>
    %11 = tpu.matmul %9, %10, %cst_9 {dimension_numbers = #tpu.dot_dimension_numbers<[1], [0], [0], [1], [0, 0, 1, 1], [], []>} : vector<32x1584xbf16>, vector<1584x256xbf16>, vector<32x256xf32> -> vector<32x256xf32>
    %c0_10 = arith.constant 0 : index
    %c0_11 = arith.constant 0 : index
    %12 = vector.load %arg5[%c0_10, %c0_11] : memref<1x256xf32, #tpu.memory_space<vmem>>, vector<1x256xf32>
    %13 = vector.broadcast %12 : vector<1x256xf32> to vector<32x256xf32>
    %14 = arith.addf %11, %13 : vector<32x256xf32>
    %cst_12 = arith.constant 0.000000e+00 : f32
    %15 = vector.broadcast %cst_12 : f32 to vector<32x256xf32>
    %16 = arith.maximumf %14, %15 : vector<32x256xf32>
    %c0_13 = arith.constant 0 : index
    %c0_14 = arith.constant 0 : index
    %17 = vector.load %arg6[%c0_13, %c0_14] : memref<1x256xf32, #tpu.memory_space<vmem>>, vector<1x256xf32>
    %18 = vector.broadcast %17 : vector<1x256xf32> to vector<32x256xf32>
    %19 = arith.mulf %16, %18 : vector<32x256xf32>
    %cst_15 = arith.constant dense<0.000000e+00> : vector<32xf32>
    %20 = vector.multi_reduction <add>, %19, %cst_15 [1] : vector<32x256xf32> to vector<32xf32>
    %21 = vector.shape_cast %20 : vector<32xf32> to vector<32x1xf32>
    %c0_16 = arith.constant 0 : index
    %c0_17 = arith.constant 0 : index
    %22 = vector.load %arg7[%c0_16, %c0_17] : memref<1x1xf32, #tpu.memory_space<vmem>>, vector<1x1xf32>
    %23 = vector.broadcast %22 : vector<1x1xf32> to vector<32x1xf32>
    %24 = arith.addf %21, %23 : vector<32x1xf32>
    %c0_18 = arith.constant 0 : index
    %c0_19 = arith.constant 0 : index
    %25 = vector.load %arg8[%c0_18, %c0_19] : memref<1x256xf32, #tpu.memory_space<vmem>>, vector<1x256xf32>
    %26 = vector.broadcast %25 : vector<1x256xf32> to vector<32x256xf32>
    %27 = arith.mulf %16, %26 : vector<32x256xf32>
    %cst_20 = arith.constant dense<0.000000e+00> : vector<32xf32>
    %28 = vector.multi_reduction <add>, %27, %cst_20 [1] : vector<32x256xf32> to vector<32xf32>
    %29 = vector.shape_cast %28 : vector<32xf32> to vector<32x1xf32>
    %c0_21 = arith.constant 0 : index
    %c0_22 = arith.constant 0 : index
    %30 = vector.load %arg9[%c0_21, %c0_22] : memref<1x1xf32, #tpu.memory_space<vmem>>, vector<1x1xf32>
    %31 = vector.broadcast %30 : vector<1x1xf32> to vector<32x1xf32>
    %32 = arith.addf %29, %31 : vector<32x1xf32>
    %cst_23 = arith.constant 0.000000e+00 : f32
    %33 = vector.broadcast %cst_23 : f32 to vector<32x1xf32>
    %34 = arith.subf %33, %24 : vector<32x1xf32>
    %35 = math.exp %34 : vector<32x1xf32>
    %cst_24 = arith.constant 1.000000e+00 : f32
    %36 = vector.broadcast %cst_24 : f32 to vector<32x1xf32>
    %37 = arith.addf %36, %35 : vector<32x1xf32>
    %cst_25 = arith.constant 1.000000e+00 : f32
    %38 = vector.broadcast %cst_25 : f32 to vector<32x1xf32>
    %39 = arith.divf %38, %37 : vector<32x1xf32>
    %cst_26 = arith.constant 0.000000e+00 : f32
    %40 = vector.broadcast %cst_26 : f32 to vector<32x1xf32>
    %41 = arith.subf %40, %32 : vector<32x1xf32>
    %42 = math.exp %41 : vector<32x1xf32>
    %cst_27 = arith.constant 1.000000e+00 : f32
    %43 = vector.broadcast %cst_27 : f32 to vector<32x1xf32>
    %44 = arith.addf %43, %42 : vector<32x1xf32>
    %cst_28 = arith.constant 1.000000e+00 : f32
    %45 = vector.broadcast %cst_28 : f32 to vector<32x1xf32>
    %46 = arith.divf %45, %44 : vector<32x1xf32>
    %47 = tpu.iota {dimensions = array<i32: 1>} : vector<1x256xi32>
    %c152_i32 = arith.constant 152 : i32
    %48 = vector.broadcast %c152_i32 : i32 to vector<1x256xi32>
    %49 = arith.cmpi eq, %47, %48 : vector<1x256xi32>
    %50 = arith.extui %49 : vector<1x256xi1> to vector<1x256xi32>
    %51 = arith.sitofp %50 : vector<1x256xi32> to vector<1x256xf32>
    %c153_i32 = arith.constant 153 : i32
    %52 = vector.broadcast %c153_i32 : i32 to vector<1x256xi32>
    %53 = arith.cmpi eq, %47, %52 : vector<1x256xi32>
    %54 = arith.extui %53 : vector<1x256xi1> to vector<1x256xi32>
    %55 = arith.sitofp %54 : vector<1x256xi32> to vector<1x256xf32>
    %56 = vector.broadcast %39 : vector<32x1xf32> to vector<32x256xf32>
    %57 = vector.broadcast %55 : vector<1x256xf32> to vector<32x256xf32>
    %58 = arith.mulf %56, %57 : vector<32x256xf32>
    %59 = vector.broadcast %51 : vector<1x256xf32> to vector<32x256xf32>
    %60 = arith.addf %59, %58 : vector<32x256xf32>
    %c154_i32 = arith.constant 154 : i32
    %61 = vector.broadcast %c154_i32 : i32 to vector<1x256xi32>
    %62 = arith.cmpi eq, %47, %61 : vector<1x256xi32>
    %63 = arith.extui %62 : vector<1x256xi1> to vector<1x256xi32>
    %64 = arith.sitofp %63 : vector<1x256xi32> to vector<1x256xf32>
    %65 = vector.broadcast %46 : vector<32x1xf32> to vector<32x256xf32>
    %66 = vector.broadcast %64 : vector<1x256xf32> to vector<32x256xf32>
    %67 = arith.mulf %65, %66 : vector<32x256xf32>
    %68 = arith.addf %60, %67 : vector<32x256xf32>
    %69 = arith.mulf %11, %68 : vector<32x256xf32>
    %70 = vector.shape_cast %69 : vector<32x256xf32> to vector<2x16x256xf32>
    %cst_29 = arith.constant dense<0.000000e+00> : vector<2x256xf32>
    %71 = vector.multi_reduction <add>, %70, %cst_29 [1] : vector<2x16x256xf32> to vector<2x256xf32>
    %cst_30 = arith.constant dense<0.000000e+00> : vector<2xf32>
    %72 = vector.multi_reduction <add>, %71, %cst_30 [1] : vector<2x256xf32> to vector<2xf32>
    %73 = vector.shape_cast %72 : vector<2xf32> to vector<2x1xf32>
    %cst_31 = arith.constant 6.250000e-02 : f32
    %74 = vector.broadcast %cst_31 : f32 to vector<2x1xf32>
    %75 = arith.mulf %73, %74 : vector<2x1xf32>
    %c0_32 = arith.constant 0 : index
    %c0_33 = arith.constant 0 : index
    %76 = vector.load %arg10[%c0_32, %c0_33] : memref<1x1xf32, #tpu.memory_space<vmem>>, vector<1x1xf32>
    %77 = vector.broadcast %76 : vector<1x1xf32> to vector<2x1xf32>
    %78 = arith.addf %75, %77 : vector<2x1xf32>
    %c0_34 = arith.constant 0 : index
    %c0_35 = arith.constant 0 : index
    %79 = vector.load %arg11[%c0_34, %c0_35] : memref<2x1xf32, #tpu.memory_space<vmem>>, vector<2x1xf32>
    tpu.vector_store %arg11[%c0_34, %c0_35], %78 {strides = array<i32>} : memref<2x1xf32, #tpu.memory_space<vmem>>, vector<2x1xf32>,
    return
  }
  func.func @transform_0(%arg0: i32) -> (i32, i32, i32) {
    %c0_i32 = arith.constant 0 : i32
    %c0_i32_0 = arith.constant 0 : i32
    %c0_i32_1 = arith.constant 0 : i32
    return %arg0, %c0_i32, %c0_i32_0 : i32, i32, i32
  }
  func.func @transform_1(%arg0: i32) -> (i32, i32) {
    %c0_i32 = arith.constant 0 : i32
    %c0_i32_0 = arith.constant 0 : i32
    %c0_i32_1 = arith.constant 0 : i32
    return %c0_i32, %c0_i32_0 : i32, i32
  }
  func.func @transform_2(%arg0: i32) -> (i32, i32) {
    %c0_i32 = arith.constant 0 : i32
    %c0_i32_0 = arith.constant 0 : i32
    %c0_i32_1 = arith.constant 0 : i32
    return %c0_i32, %c0_i32_0 : i32, i32
  }
  func.func @transform_3(%arg0: i32) -> (i32, i32) {
    %c0_i32 = arith.constant 0 : i32
    %c0_i32_0 = arith.constant 0 : i32
    %c0_i32_1 = arith.constant 0 : i32
    return %c0_i32, %c0_i32_0 : i32, i32
  }
  func.func @transform_4(%arg0: i32) -> (i32, i32) {
    %c0_i32 = arith.constant 0 : i32
    %c0_i32_0 = arith.constant 0 : i32
    %c0_i32_1 = arith.constant 0 : i32
    return %c0_i32, %c0_i32_0 : i32, i32
  }
  func.func @transform_5(%arg0: i32) -> (i32, i32) {
    %c0_i32 = arith.constant 0 : i32
    %c0_i32_0 = arith.constant 0 : i32
    %c0_i32_1 = arith.constant 0 : i32
    return %c0_i32, %c0_i32_0 : i32, i32
  }
  func.func @transform_6(%arg0: i32) -> (i32, i32) {
    %c0_i32 = arith.constant 0 : i32
    %c0_i32_0 = arith.constant 0 : i32
    %c0_i32_1 = arith.constant 0 : i32
    return %c0_i32, %c0_i32_0 : i32, i32
  }
  func.func @transform_7(%arg0: i32) -> (i32, i32) {
    %c0_i32 = arith.constant 0 : i32
    %c0_i32_0 = arith.constant 0 : i32
    %c0_i32_1 = arith.constant 0 : i32
    return %c0_i32, %c0_i32_0 : i32, i32
  }
  func.func @transform_8(%arg0: i32) -> (i32, i32) {
    %c0_i32 = arith.constant 0 : i32
    %c0_i32_0 = arith.constant 0 : i32
    %c0_i32_1 = arith.constant 0 : i32
    return %c0_i32, %c0_i32_0 : i32, i32
  }
  func.func @transform_9(%arg0: i32) -> (i32, i32) {
    %c0_i32 = arith.constant 0 : i32
    %c0_i32_0 = arith.constant 0 : i32
    %c0_i32_1 = arith.constant 0 : i32
    return %c0_i32, %c0_i32_0 : i32, i32
  }
  func.func @transform_10(%arg0: i32) -> (i32, i32) {
    %c0_i32 = arith.constant 0 : i32
    %c0_i32_0 = arith.constant 0 : i32
    return %arg0, %c0_i32 : i32, i32
  }
}

</mosaic_0001>

<llo_original>
// kernel: brain_focused_forward.1
$region0: #{brain_focused_forward.1}
  #allocation0 [shape = 'u32[]', space=smem, size = 0x4, offset = 0x4, fixed_abs, tag = 'smem constant byte address 0x4 - core index']
  #allocation1 [shape = 'u32[144,128]{1,0:T(1,128)}', space=vmem, size = 0x12000, scoped, tag = 'internal scratch']
  #allocation2 [shape = 'f32[1,1]{1,0:T(1,128)S(1)}', space=vmem, size = 0x200, scoped, tag = 'scoped memory for brain_focused_forward.1']
  #allocation3 [shape = 'f32[1,1]{1,0:T(1,128)S(1)}', space=vmem, size = 0x200, scoped, tag = 'scoped memory for brain_focused_forward.1']
  #allocation4 [shape = 'f32[1,1]{1,0:T(1,128)S(1)}', space=vmem, size = 0x200, scoped, tag = 'scoped memory for brain_focused_forward.1']
  %s0 = inlined_call_operand.vmem [shape: bf16[2,16,16], index: 0, kind: input, shape index: {}]
  %s1 = inlined_call_operand.vmem [shape: bf16[16,1584], index: 1, kind: input, shape index: {}]
  %s2 = inlined_call_operand.vmem [shape: f32[1,1584], index: 2, kind: input, shape index: {}]
  %s3 = inlined_call_operand.vmem [shape: bf16[1584,256], index: 3, kind: input, shape index: {}]
  %s4 = inlined_call_operand.vmem [shape: f32[1,256], index: 4, kind: input, shape index: {}]
  %s5 = inlined_call_operand.vmem [shape: f32[1,256], index: 5, kind: input, shape index: {}]
  %s6 = inlined_call_operand.<no memory space> [shape: f32[1,1], index: 6, kind: input, shape index: {}]
  %s7 = inlined_call_operand.vmem [shape: f32[1,256], index: 7, kind: input, shape index: {}]
  %s8 = inlined_call_operand.<no memory space> [shape: f32[1,1], index: 8, kind: input, shape index: {}]
  %s9 = inlined_call_operand.<no memory space> [shape: f32[1,1], index: 9, kind: input, shape index: {}]
  %s10 = inlined_call_operand.vmem [shape: f32[2,1], index: 10, kind: output, shape index: {}]
  %s11 = sld [smem:[#allocation0]]
  $region50: #{brain_focused_forward.1} parent=0
    _
  %s13 = ssub.s32 1, %s11
  %s14 = scalar_select 0, %s13, %s11
  %v15 = vstv %s6
  %16 = vst [vmem:[#allocation2] sm:$0x1] %v15
  %v17 = vstv %s8
  %18 = vst [vmem:[#allocation3] sm:$0x1] %v17
  %v19 = vstv %s9
  %20 = vst [vmem:[#allocation4] sm:$0x1] %v19
  // Predicated region
  $region2: #{brain_focused_forward.1} parent=0 // pred_check
    _
  $region3: #{brain_focused_forward.1} parent=0 // pred_check_branch
    %22 = sbr.rel (0) target = $region5
  $region4: #{brain_focused_forward.1} parent=0 // pred_region
    _
  $region5: #{brain_focused_forward.1} parent=0 // pred_fallthru
    _
  // Predicated region
  $region6: #{brain_focused_forward.1} parent=0 // pred_check
    _
  $region7: #{brain_focused_forward.1} parent=0 // pred_check_branch
    %24 = sbr.rel (0) target = $region9
  $region8: #{brain_focused_forward.1} parent=0 // pred_region
    _
  $region9: #{brain_focused_forward.1} parent=0 // pred_fallthru
    _
  // Predicated region
  $region10: #{brain_focused_forward.1} parent=0 // pred_check
    _
  $region11: #{brain_focused_forward.1} parent=0 // pred_check_branch
    %26 = sbr.rel (0) target = $region13
  $region12: #{brain_focused_forward.1} parent=0 // pred_region
    _
  $region13: #{brain_focused_forward.1} parent=0 // pred_fallthru
    _
  // Predicated region
  $region14: #{brain_focused_forward.1} parent=0 // pred_check
    _
  $region15: #{brain_focused_forward.1} parent=0 // pred_check_branch
    %28 = sbr.rel (0) target = $region17
  $region16: #{brain_focused_forward.1} parent=0 // pred_region
    _
  $region17: #{brain_focused_forward.1} parent=0 // pred_fallthru
    _
  // Predicated region
  $region18: #{brain_focused_forward.1} parent=0 // pred_check
    _
  $region19: #{brain_focused_forward.1} parent=0 // pred_check_branch
    %30 = sbr.rel (0) target = $region21
  $region20: #{brain_focused_forward.1} parent=0 // pred_region
    _
  $region21: #{brain_focused_forward.1} parent=0 // pred_fallthru
    _
  // Predicated region
  $region22: #{brain_focused_forward.1} parent=0 // pred_check
    _
  $region23: #{brain_focused_forward.1} parent=0 // pred_check_branch
    %32 = sbr.rel (0) target = $region25
  $region24: #{brain_focused_forward.1} parent=0 // pred_region
    _
  $region25: #{brain_focused_forward.1} parent=0 // pred_fallthru
    _
  // Predicated region
  $region26: #{brain_focused_forward.1} parent=0 // pred_check
    _
  $region27: #{brain_focused_forward.1} parent=0 // pred_check_branch
    %34 = sbr.rel (0) target = $region29
  $region28: #{brain_focused_forward.1} parent=0 // pred_region
    _
  $region29: #{brain_focused_forward.1} parent=0 // pred_fallthru
    _
  // Predicated region
  $region30: #{brain_focused_forward.1} parent=0 // pred_check
    _
  $region31: #{brain_focused_forward.1} parent=0 // pred_check_branch
    %36 = sbr.rel (0) target = $region33
  $region32: #{brain_focused_forward.1} parent=0 // pred_region
    _
  $region33: #{brain_focused_forward.1} parent=0 // pred_fallthru
    _
  // Predicated region
  $region34: #{brain_focused_forward.1} parent=0 // pred_check
    _
  $region35: #{brain_focused_forward.1} parent=0 // pred_check_branch
    %38 = sbr.rel (0) target = $region37
  $region36: #{brain_focused_forward.1} parent=0 // pred_region
    _
  $region37: #{brain_focused_forward.1} parent=0 // pred_fallthru
    _
  // Predicated region
  $region38: #{brain_focused_forward.1} parent=0 // pred_check
    _
  $region39: #{brain_focused_forward.1} parent=0 // pred_check_branch
    %40 = sbr.rel (0) target = $region41
  $region40: #{brain_focused_forward.1} parent=0 // pred_region
    _
  $region41: #{brain_focused_forward.1} parent=0 // pred_fallthru
    _
  %v42 = vld [vmem:[%s0] sm:$0xf]
  %v43 = vld [vmem:[%s0 + $0x4] sm:$0xf]
  %v44 = vld [vmem:[%s0 + $0x8] sm:$0xf]
  %v45 = vld [vmem:[%s0 + $0xc] sm:$0xf]
  %v46 = vld [vmem:[%s1] sm:$0xff]
  %v47 = vld [vmem:[%s1 + $0x8] sm:$0xff]
  %v48 = vld [vmem:[%s1 + $0x10] sm:$0xff]
  %v49 = vld [vmem:[%s1 + $0x18] sm:$0xff]
  %v50 = vld [vmem:[%s1 + $0x20] sm:$0xff]
  %v51 = vld [vmem:[%s1 + $0x28] sm:$0xff]
  %v52 = vld [vmem:[%s1 + $0x30] sm:$0xf]
  %v53 = vld [vmem:[%s1 + $0x34] sm:$0xff]
  %v54 = vld [vmem:[%s1 + $0x3c] sm:$0xff]
  %v55 = vld [vmem:[%s1 + $0x44] sm:$0xff]
  %v56 = vld [vmem:[%s1 + $0x4c] sm:$0xff]
  %v57 = vld [vmem:[%s1 + $0x54] sm:$0xff]
  %v58 = vld [vmem:[%s1 + $0x5c] sm:$0xff]
  %v59 = vld [vmem:[%s1 + $0x64] sm:$0xf]
  %v60 = vld [vmem:[%s2] sm:$0xff]
  %v61 = vld [vmem:[%s2 + $0x8] sm:$0x1f]
  %v64 = vlaneseq
  %v65 = vshrl.u32 %v64, 7
  %v66 = vsub.s32 0, %v65
  %v67 = vrot.slane %v60, %v66
  %v68 = vlaneseq
  %v69 = vshrl.u32 %v68, 7
  %v70 = vsub.s32 1, %v69
  %v71 = vrot.slane %v60, %v70
  %v72 = vlaneseq
  %v73 = vshrl.u32 %v72, 7
  %v74 = vsub.s32 2, %v73
  %v75 = vrot.slane %v60, %v74
  %v76 = vlaneseq
  %v77 = vshrl.u32 %v76, 7
  %v78 = vsub.s32 3, %v77
  %v79 = vrot.slane %v60, %v78
  %v80 = vlaneseq
  %v81 = vshrl.u32 %v80, 7
  %v82 = vsub.s32 4, %v81
  %v83 = vrot.slane %v60, %v82
  %v84 = vlaneseq
  %v85 = vshrl.u32 %v84, 7
  %v86 = vsub.s32 5, %v85
  %v87 = vrot.slane %v60, %v86
  %v88 = vlaneseq
  %v89 = vshrl.u32 %v88, 7
  %v90 = vsub.s32 6, %v89
  %v91 = vrot.slane %v60, %v90
  %v92 = vlaneseq
  %v93 = vshrl.u32 %v92, 7
  %v94 = vsub.s32 7, %v93
  %v95 = vrot.slane %v60, %v94
  %v96 = vlaneseq
  %v97 = vshrl.u32 %v96, 7
  %v98 = vsub.s32 0, %v97
  %v99 = vrot.slane %v61, %v98
  %v100 = vlaneseq
  %v101 = vshrl.u32 %v100, 7
  %v102 = vsub.s32 1, %v101
  %v103 = vrot.slane %v61, %v102
  %v104 = vlaneseq
  %v105 = vshrl.u32 %v104, 7
  %v106 = vsub.s32 2, %v105
  %v107 = vrot.slane %v61, %v106
  %v108 = vlaneseq
  %v109 = vshrl.u32 %v108, 7
  %v110 = vsub.s32 3, %v109
  %v111 = vrot.slane %v61, %v110
  %v112 = vlaneseq
  %v113 = vshrl.u32 %v112, 7
  %v114 = vsub.s32 4, %v113
  %v115 = vrot.slane %v61, %v114
  %v133 = vunpack.c.l.b16 %v42
  %v134 = vunpack.c.l.b16 %v43
  %v135 = vunpack.c.l.b16 %v44
  %v136 = vunpack.c.l.b16 %v45
  %v137 = vpack.c.b16 %v134, %v133
  %v138 = vpack.c.b16 %v136, %v135
  %v153 = vunpack.c.l.b16 %v46
  %v154 = vunpack.c.h.b16 %v46
  %v155 = vunpack.c.l.b16 %v47
  %v156 = vunpack.c.h.b16 %v47
  %v157 = vunpack.c.l.b16 %v48
  %v158 = vunpack.c.h.b16 %v48
  %v159 = vunpack.c.l.b16 %v49
  %v160 = vunpack.c.h.b16 %v49
  %v161 = vunpack.c.l.b16 %v50
  %v162 = vunpack.c.h.b16 %v50
  %v163 = vunpack.c.l.b16 %v51
  %v164 = vunpack.c.h.b16 %v51
  %v165 = vunpack.c.l.b16 %v52
  %v166 = vunpack.c.l.b16 %v53
  %v167 = vunpack.c.h.b16 %v53
  %v168 = vunpack.c.l.b16 %v54
  %v169 = vunpack.c.h.b16 %v54
  %v170 = vunpack.c.l.b16 %v55
  %v171 = vunpack.c.h.b16 %v55
  %v172 = vunpack.c.l.b16 %v56
  %v173 = vunpack.c.h.b16 %v56
  %v174 = vunpack.c.l.b16 %v57
  %v175 = vunpack.c.h.b16 %v57
  %v176 = vunpack.c.l.b16 %v58
  %v177 = vunpack.c.h.b16 %v58
  %v178 = vunpack.c.l.b16 %v59
  %v179 = vpack.c.b16 %v166, %v153
  %v180 = vpack.c.b16 %v167, %v154
  %v181 = vpack.c.b16 %v168, %v155
  %v182 = vpack.c.b16 %v169, %v156
  %v183 = vpack.c.b16 %v170, %v157
  %v184 = vpack.c.b16 %v171, %v158
  %v185 = vpack.c.b16 %v172, %v159
  %v186 = vpack.c.b16 %v173, %v160
  %v187 = vpack.c.b16 %v174, %v161
  %v188 = vpack.c.b16 %v175, %v162
  %v189 = vpack.c.b16 %v176, %v163
  %v190 = vpack.c.b16 %v177, %v164
  %v191 = vpack.c.b16 %v178, %v165
  %vm205 = vcmask 130048
  %v207 = vsel %vm205, %v137, 0
  %v210 = vsel %vm205, %v138, 0
  %212 = vmatprep.subr.bf16.mxu0 %v180
  %213 = vmatpush1.bf16.msra.mxu0 %v179
  %214 = vmatprep.subr.bf16.mxu0 0
  %215 = vmatpush1.bf16.msra.mxu0 0
  %216 = vmatprep.subr.bf16.mxu0 0
  %217 = vmatpush1.bf16.msra.mxu0 0
  %218 = vmatprep.subr.bf16.mxu0 0
  %219 = vmatpush1.bf16.msra.mxu0 0
  %220 = vmatprep.subr.bf16.mxu0 0
  %221 = vmatpush1.bf16.msra.mxu0 0
  %222 = vmatprep.subr.bf16.mxu0 0
  %223 = vmatpush1.bf16.msra.mxu0 0
  %224 = vmatprep.subr.bf16.mxu0 0
  %225 = vmatpush1.bf16.msra.mxu0 0
  %226 = vmatprep.subr.bf16.mxu0 0
  %227 = vmatpush1.bf16.msra.mxu0 0
  %228 = vmatprep.subr.bf16.mxu0 0
  %229 = vmatpush1.bf16.msra.mxu0 0
  %230 = vmatprep.subr.bf16.mxu0 0
  %231 = vmatpush1.bf16.msra.mxu0 0
  %232 = vmatprep.subr.bf16.mxu0 0
  %233 = vmatpush1.bf16.msra.mxu0 0
  %234 = vmatprep.subr.bf16.mxu0 0
  %235 = vmatpush1.bf16.msra.mxu0 0
  %236 = vmatprep.subr.bf16.mxu0 0
  %237 = vmatpush1.bf16.msra.mxu0 0
  %238 = vmatprep.subr.bf16.mxu0 0
  %239 = vmatpush1.bf16.msra.mxu0 0
  %240 = vmatprep.subr.bf16.mxu0 0
  %241 = vmatpush1.bf16.msra.mxu0 0
  %242 = vmatprep.subr.bf16.mxu0 0
  %243 = vmatpush1.bf16.msra.mxu0 0
  %244 = vmatprep.mubr.bf16.mxu0 0
  %245 = vmatmul.mubr.bf16.gmra.mrb[0].mxu0 %v207
  %v246 = vpop.f32.mrb[0].mxu0
  %v247 = vadd.f32 %v67, %v246
  %v248 = vpop.f32.mrb[0].mxu0
  %v249 = vadd.f32 %v71, %v248
  %v250 = vpop.f32.mrb[0].mxu0
  %v251 = vadd.f32 %v67, %v250
  %v252 = vpop.f32.mrb[0].mxu0
  %v253 = vadd.f32 %v71, %v252
  %254 = vmatprep.mubr.bf16.mxu0 0
  %255 = vmatmul.mubr.bf16.gmra.mrb[0].mxu0 %v210
  %v256 = vpop.f32.mrb[0].mxu0
  %v257 = vadd.f32 %v67, %v256
  %v258 = vpop.f32.mrb[0].mxu0
  %v259 = vadd.f32 %v71, %v258
  %v260 = vpop.f32.mrb[0].mxu0
  %v261 = vadd.f32 %v67, %v260
  %v262 = vpop.f32.mrb[0].mxu0
  %v263 = vadd.f32 %v71, %v262
  %264 = vdwg.mxu0
  %265 = vmatprep.subr.bf16.mxu0 %v182
  %266 = vmatpush1.bf16.msra.mxu0 %v181
  %267 = vmatprep.subr.bf16.mxu0 0
  %268 = vmatpush1.bf16.msra.mxu0 0
  %269 = vmatprep.subr.bf16.mxu0 0
  %270 = vmatpush1.bf16.msra.mxu0 0
  %271 = vmatprep.subr.bf16.mxu0 0
  %272 = vmatpush1.bf16.msra.mxu0 0
  %273 = vmatprep.subr.bf16.mxu0 0
  %274 = vmatpush1.bf16.msra.mxu0 0
  %275 = vmatprep.subr.bf16.mxu0 0
  %276 = vmatpush1.bf16.msra.mxu0 0
  %277 = vmatprep.subr.bf16.mxu0 0
  %278 = vmatpush1.bf16.msra.mxu0 0
  %279 = vmatprep.subr.bf16.mxu0 0
  %280 = vmatpush1.bf16.msra.mxu0 0
  %281 = vmatprep.subr.bf16.mxu0 0
  %282 = vmatpush1.bf16.msra.mxu0 0
  %283 = vmatprep.subr.bf16.mxu0 0
  %284 = vmatpush1.bf16.msra.mxu0 0
  %285 = vmatprep.subr.bf16.mxu0 0
  %286 = vmatpush1.bf16.msra.mxu0 0
  %287 = vmatprep.subr.bf16.mxu0 0
  %288 = vmatpush1.bf16.msra.mxu0 0
  %289 = vmatprep.subr.bf16.mxu0 0
  %290 = vmatpush1.bf16.msra.mxu0 0
  %291 = vmatprep.subr.bf16.mxu0 0
  %292 = vmatpush1.bf16.msra.mxu0 0
  %293 = vmatprep.subr.bf16.mxu0 0
  %294 = vmatpush1.bf16.msra.mxu0 0
  %295 = vmatprep.subr.bf16.mxu0 0
  %296 = vmatpush1.bf16.msra.mxu0 0
  %297 = vmatprep.mubr.bf16.mxu0 0
  %298 = vmatmul.mubr.bf16.gmra.mrb[0].mxu0 %v207
  %v299 = vpop.f32.mrb[0].mxu0
  %v300 = vadd.f32 %v75, %v299
  %v301 = vpop.f32.mrb[0].mxu0
  %v302 = vadd.f32 %v79, %v301
  %v303 = vpop.f32.mrb[0].mxu0
  %v304 = vadd.f32 %v75, %v303
  %v305 = vpop.f32.mrb[0].mxu0
  %v306 = vadd.f32 %v79, %v305
  %307 = vmatprep.mubr.bf16.mxu0 0
  %308 = vmatmul.mubr.bf16.gmra.mrb[0].mxu0 %v210
  %v309 = vpop.f32.mrb[0].mxu0
  %v310 = vadd.f32 %v75, %v309
  %v311 = vpop.f32.mrb[0].mxu0
  %v312 = vadd.f32 %v79, %v311
  %v313 = vpop.f32.mrb[0].mxu0
  %v314 = vadd.f32 %v75, %v313
  %v315 = vpop.f32.mrb[0].mxu0
  %v316 = vadd.f32 %v79, %v315
  %317 = vdwg.mxu0
  %318 = vmatprep.subr.bf16.mxu0 %v184
  %319 = vmatpush1.bf16.msra.mxu0 %v183
  %320 = vmatprep.subr.bf16.mxu0 0
  %321 = vmatpush1.bf16.msra.mxu0 0
  %322 = vmatprep.subr.bf16.mxu0 0
  %323 = vmatpush1.bf16.msra.mxu0 0
  %324 = vmatprep.subr.bf16.mxu0 0
  %325 = vmatpush1.bf16.msra.mxu0 0
  %326 = vmatprep.subr.bf16.mxu0 0
  %327 = vmatpush1.bf16.msra.mxu0 0
  %328 = vmatprep.subr.bf16.mxu0 0
  %329 = vmatpush1.bf16.msra.mxu0 0
  %330 = vmatprep.subr.bf16.mxu0 0
  %331 = vmatpush1.bf16.msra.mxu0 0
  %332 = vmatprep.subr.bf16.mxu0 0
  %333 = vmatpush1.bf16.msra.mxu0 0
  %334 = vmatprep.subr.bf16.mxu0 0
  %335 = vmatpush1.bf16.msra.mxu0 0
  %336 = vmatprep.subr.bf16.mxu0 0
  %337 = vmatpush1.bf16.msra.mxu0 0
  %338 = vmatprep.subr.bf16.mxu0 0
  %339 = vmatpush1.bf16.msra.mxu0 0
  %340 = vmatprep.subr.bf16.mxu0 0
  %341 = vmatpush1.bf16.msra.mxu0 0
  %342 = vmatprep.subr.bf16.mxu0 0
  %343 = vmatpush1.bf16.msra.mxu0 0
  %344 = vmatprep.subr.bf16.mxu0 0
  %345 = vmatpush1.bf16.msra.mxu0 0
  %346 = vmatprep.subr.bf16.mxu0 0
  %347 = vmatpush1.bf16.msra.mxu0 0
  %348 = vmatprep.subr.bf16.mxu0 0
  %349 = vmatpush1.bf16.msra.mxu0 0
  %350 = vmatprep.mubr.bf16.mxu0 0
  %351 = vmatmul.mubr.bf16.gmra.mrb[0].mxu0 %v207
  %v352 = vpop.f32.mrb[0].mxu0
  %v353 = vadd.f32 %v83, %v352
  %v354 = vpop.f32.mrb[0].mxu0
  %v355 = vadd.f32 %v87, %v354
  %v356 = vpop.f32.mrb[0].mxu0
  %v357 = vadd.f32 %v83, %v356
  %v358 = vpop.f32.mrb[0].mxu0
  %v359 = vadd.f32 %v87, %v358
  %360 = vmatprep.mubr.bf16.mxu0 0
  %361 = vmatmul.mubr.bf16.gmra.mrb[0].mxu0 %v210
  %v362 = vpop.f32.mrb[0].mxu0
  %v363 = vadd.f32 %v83, %v362
  %v364 = vpop.f32.mrb[0].mxu0
  %v365 = vadd.f32 %v87, %v364
  %v366 = vpop.f32.mrb[0].mxu0
  %v367 = vadd.f32 %v83, %v366
  %v368 = vpop.f32.mrb[0].mxu0
  %v369 = vadd.f32 %v87, %v368
  %370 = vdwg.mxu0
  %371 = vmatprep.subr.bf16.mxu0 %v186
  %372 = vmatpush1.bf16.msra.mxu0 %v185
  %373 = vmatprep.subr.bf16.mxu0 0
  %374 = vmatpush1.bf16.msra.mxu0 0
  %375 = vmatprep.subr.bf16.mxu0 0
  %376 = vmatpush1.bf16.msra.mxu0 0
  %377 = vmatprep.subr.bf16.mxu0 0
  %378 = vmatpush1.bf16.msra.mxu0 0
  %379 = vmatprep.subr.bf16.mxu0 0
  %380 = vmatpush1.bf16.msra.mxu0 0
  %381 = vmatprep.subr.bf16.mxu0 0
  %382 = vmatpush1.bf16.msra.mxu0 0
  %383 = vmatprep.subr.bf16.mxu0 0
  %384 = vmatpush1.bf16.msra.mxu0 0
  %385 = vmatprep.subr.bf16.mxu0 0
  %386 = vmatpush1.bf16.msra.mxu0 0
  %387 = vmatprep.subr.bf16.mxu0 0
  %388 = vmatpush1.bf16.msra.mxu0 0
  %389 = vmatprep.subr.bf16.mxu0 0
  %390 = vmatpush1.bf16.msra.mxu0 0
  %391 = vmatprep.subr.bf16.mxu0 0
  %392 = vmatpush1.bf16.msra.mxu0 0
  %393 = vmatprep.subr.bf16.mxu0 0
  %394 = vmatpush1.bf16.msra.mxu0 0
  %395 = vmatprep.subr.bf16.mxu0 0
  %396 = vmatpush1.bf16.msra.mxu0 0
  %397 = vmatprep.subr.bf16.mxu0 0
  %398 = vmatpush1.bf16.msra.mxu0 0
  %399 = vmatprep.subr.bf16.mxu0 0
  %400 = vmatpush1.bf16.msra.mxu0 0
  %401 = vmatprep.subr.bf16.mxu0 0
  %402 = vmatpush1.bf16.msra.mxu0 0
  %403 = vmatprep.mubr.bf16.mxu0 0
  %404 = vmatmul.mubr.bf16.gmra.mrb[0].mxu0 %v207
  %v405 = vpop.f32.mrb[0].mxu0
  %v406 = vadd.f32 %v91, %v405
  %v407 = vpop.f32.mrb[0].mxu0
  %v408 = vadd.f32 %v95, %v407
  %v409 = vpop.f32.mrb[0].mxu0
  %v410 = vadd.f32 %v91, %v409
  %v411 = vpop.f32.mrb[0].mxu0
  %v412 = vadd.f32 %v95, %v411
  %413 = vmatprep.mubr.bf16.mxu0 0
  %414 = vmatmul.mubr.bf16.gmra.mrb[0].mxu0 %v210
  %v415 = vpop.f32.mrb[0].mxu0
  %v416 = vadd.f32 %v91, %v415
  %v417 = vpop.f32.mrb[0].mxu0
  %v418 = vadd.f32 %v95, %v417
  %v419 = vpop.f32.mrb[0].mxu0
  %v420 = vadd.f32 %v91, %v419
  %v421 = vpop.f32.mrb[0].mxu0
  %v422 = vadd.f32 %v95, %v421
  %423 = vdwg.mxu0
  %424 = vmatprep.subr.bf16.mxu0 %v188
  %425 = vmatpush1.bf16.msra.mxu0 %v187
  %426 = vmatprep.subr.bf16.mxu0 0
  %427 = vmatpush1.bf16.msra.mxu0 0
  %428 = vmatprep.subr.bf16.mxu0 0
  %429 = vmatpush1.bf16.msra.mxu0 0
  %430 = vmatprep.subr.bf16.mxu0 0
  %431 = vmatpush1.bf16.msra.mxu0 0
  %432 = vmatprep.subr.bf16.mxu0 0
  %433 = vmatpush1.bf16.msra.mxu0 0
  %434 = vmatprep.subr.bf16.mxu0 0
  %435 = vmatpush1.bf16.msra.mxu0 0
  %436 = vmatprep.subr.bf16.mxu0 0
  %437 = vmatpush1.bf16.msra.mxu0 0
  %438 = vmatprep.subr.bf16.mxu0 0
  %439 = vmatpush1.bf16.msra.mxu0 0
  %440 = vmatprep.subr.bf16.mxu0 0
  %441 = vmatpush1.bf16.msra.mxu0 0
  %442 = vmatprep.subr.bf16.mxu0 0
  %443 = vmatpush1.bf16.msra.mxu0 0
  %444 = vmatprep.subr.bf16.mxu0 0
  %445 = vmatpush1.bf16.msra.mxu0 0
  %446 = vmatprep.subr.bf16.mxu0 0
  %447 = vmatpush1.bf16.msra.mxu0 0
  %448 = vmatprep.subr.bf16.mxu0 0
  %449 = vmatpush1.bf16.msra.mxu0 0
  %450 = vmatprep.subr.bf16.mxu0 0
  %451 = vmatpush1.bf16.msra.mxu0 0
  %452 = vmatprep.subr.bf16.mxu0 0
  %453 = vmatpush1.bf16.msra.mxu0 0
  %454 = vmatprep.subr.bf16.mxu0 0
  %455 = vmatpush1.bf16.msra.mxu0 0
  %456 = vmatprep.mubr.bf16.mxu0 0
  %457 = vmatmul.mubr.bf16.gmra.mrb[0].mxu0 %v207
  %v458 = vpop.f32.mrb[0].mxu0
  %v459 = vadd.f32 %v99, %v458
  %v460 = vpop.f32.mrb[0].mxu0
  %v461 = vadd.f32 %v103, %v460
  %v462 = vpop.f32.mrb[0].mxu0
  %v463 = vadd.f32 %v99, %v462
  %v464 = vpop.f32.mrb[0].mxu0
  %v465 = vadd.f32 %v103, %v464
  %466 = vmatprep.mubr.bf16.mxu0 0
  %467 = vmatmul.mubr.bf16.gmra.mrb[0].mxu0 %v210
  %v468 = vpop.f32.mrb[0].mxu0
  %v469 = vadd.f32 %v99, %v468
  %v470 = vpop.f32.mrb[0].mxu0
  %v471 = vadd.f32 %v103, %v470
  %v472 = vpop.f32.mrb[0].mxu0
  %v473 = vadd.f32 %v99, %v472
  %v474 = vpop.f32.mrb[0].mxu0
  %v475 = vadd.f32 %v103, %v474
  %476 = vdwg.mxu0
  %477 = vmatprep.subr.bf16.mxu0 %v190
  %478 = vmatpush1.bf16.msra.mxu0 %v189
  %479 = vmatprep.subr.bf16.mxu0 0
  %480 = vmatpush1.bf16.msra.mxu0 0
  %481 = vmatprep.subr.bf16.mxu0 0
  %482 = vmatpush1.bf16.msra.mxu0 0
  %483 = vmatprep.subr.bf16.mxu0 0
  %484 = vmatpush1.bf16.msra.mxu0 0
  %485 = vmatprep.subr.bf16.mxu0 0
  %486 = vmatpush1.bf16.msra.mxu0 0
  %487 = vmatprep.subr.bf16.mxu0 0
  %488 = vmatpush1.bf16.msra.mxu0 0
  %489 = vmatprep.subr.bf16.mxu0 0
  %490 = vmatpush1.bf16.msra.mxu0 0
  %491 = vmatprep.subr.bf16.mxu0 0
  %492 = vmatpush1.bf16.msra.mxu0 0
  %493 = vmatprep.subr.bf16.mxu0 0
  %494 = vmatpush1.bf16.msra.mxu0 0
  %495 = vmatprep.subr.bf16.mxu0 0
  %496 = vmatpush1.bf16.msra.mxu0 0
  %497 = vmatprep.subr.bf16.mxu0 0
  %498 = vmatpush1.bf16.msra.mxu0 0
  %499 = vmatprep.subr.bf16.mxu0 0
  %500 = vmatpush1.bf16.msra.mxu0 0
  %501 = vmatprep.subr.bf16.mxu0 0
  %502 = vmatpush1.bf16.msra.mxu0 0
  %503 = vmatprep.subr.bf16.mxu0 0
  %504 = vmatpush1.bf16.msra.mxu0 0
  %505 = vmatprep.subr.bf16.mxu0 0
  %506 = vmatpush1.bf16.msra.mxu0 0
  %507 = vmatprep.subr.bf16.mxu0 0
  %508 = vmatpush1.bf16.msra.mxu0 0
  %509 = vmatprep.mubr.bf16.mxu0 0
  %510 = vmatmul.mubr.bf16.gmra.mrb[0].mxu0 %v207
  %v511 = vpop.f32.mrb[0].mxu0
  %v512 = vadd.f32 %v107, %v511
  %v513 = vpop.f32.mrb[0].mxu0
  %v514 = vadd.f32 %v111, %v513
  %v515 = vpop.f32.mrb[0].mxu0
  %v516 = vadd.f32 %v107, %v515
  %v517 = vpop.f32.mrb[0].mxu0
  %v518 = vadd.f32 %v111, %v517
  %519 = vmatprep.mubr.bf16.mxu0 0
  %520 = vmatmul.mubr.bf16.gmra.mrb[0].mxu0 %v210
  %v521 = vpop.f32.mrb[0].mxu0
  %v522 = vadd.f32 %v107, %v521
  %v523 = vpop.f32.mrb[0].mxu0
  %v524 = vadd.f32 %v111, %v523
  %v525 = vpop.f32.mrb[0].mxu0
  %v526 = vadd.f32 %v107, %v525
  %v527 = vpop.f32.mrb[0].mxu0
  %v528 = vadd.f32 %v111, %v527
  %529 = vdwg.mxu0
  %530 = vmatprep.subr.bf16.mxu0 0
  %531 = vmatpush1.bf16.msra.mxu0 %v191
  %532 = vmatprep.subr.bf16.mxu0 0
  %533 = vmatpush1.bf16.msra.mxu0 0
  %534 = vmatprep.subr.bf16.mxu0 0
  %535 = vmatpush1.bf16.msra.mxu0 0
  %536 = vmatprep.subr.bf16.mxu0 0
  %537 = vmatpush1.bf16.msra.mxu0 0
  %538 = vmatprep.subr.bf16.mxu0 0
  %539 = vmatpush1.bf16.msra.mxu0 0
  %540 = vmatprep.subr.bf16.mxu0 0
  %541 = vmatpush1.bf16.msra.mxu0 0
  %542 = vmatprep.subr.bf16.mxu0 0
  %543 = vmatpush1.bf16.msra.mxu0 0
  %544 = vmatprep.subr.bf16.mxu0 0
  %545 = vmatpush1.bf16.msra.mxu0 0
  %546 = vmatprep.subr.bf16.mxu0 0
  %547 = vmatpush1.bf16.msra.mxu0 0
  %548 = vmatprep.subr.bf16.mxu0 0
  %549 = vmatpush1.bf16.msra.mxu0 0
  %550 = vmatprep.subr.bf16.mxu0 0
  %551 = vmatpush1.bf16.msra.mxu0 0
  %552 = vmatprep.subr.bf16.mxu0 0
  %553 = vmatpush1.bf16.msra.mxu0 0
  %554 = vmatprep.subr.bf16.mxu0 0
  %555 = vmatpush1.bf16.msra.mxu0 0
  %556 = vmatprep.subr.bf16.mxu0 0
  %557 = vmatpush1.bf16.msra.mxu0 0
  %558 = vmatprep.subr.bf16.mxu0 0
  %559 = vmatpush1.bf16.msra.mxu0 0
  %560 = vmatprep.subr.bf16.mxu0 0
  %561 = vmatpush1.bf16.msra.mxu0 0
  %562 = vmatprep.mubr.bf16.mxu0 0
  %563 = vmatmul.mubr.bf16.gmra.mrb[0].mxu0 %v207
  %v564 = vpop.f32.mrb[0].mxu0
  %v565 = vadd.f32 %v115, %v564
  %v566 = vpop.f32.mrb[0].mxu0
  %v567 = vpop.f32.mrb[0].mxu0
  %v568 = vadd.f32 %v115, %v567
  %v569 = vpop.f32.mrb[0].mxu0
  %570 = vmatprep.mubr.bf16.mxu0 0
  %571 = vmatmul.mubr.bf16.gmra.mrb[0].mxu0 %v210
  %v572 = vpop.f32.mrb[0].mxu0
  %v573 = vadd.f32 %v115, %v572
  %v574 = vpop.f32.mrb[0].mxu0
  %v575 = vpop.f32.mrb[0].mxu0
  %v576 = vadd.f32 %v115, %v575
  %v577 = vpop.f32.mrb[0].mxu0
  %578 = vdwg.mxu0
  %v579 = vmax.f32 %v247, 0.0
  %v580 = vmax.f32 %v249, 0.0
  %v581 = vmax.f32 %v300, 0.0
  %v582 = vmax.f32 %v302, 0.0
  %v583 = vmax.f32 %v353, 0.0
  %v584 = vmax.f32 %v355, 0.0
  %v585 = vmax.f32 %v406, 0.0
  %v586 = vmax.f32 %v408, 0.0
  %v587 = vmax.f32 %v459, 0.0
  %v588 = vmax.f32 %v461, 0.0
  %v589 = vmax.f32 %v512, 0.0
  %v590 = vmax.f32 %v514, 0.0
  %v591 = vmax.f32 %v565, 0.0
  %v592 = vmax.f32 %v251, 0.0
  %v593 = vmax.f32 %v253, 0.0
  %v594 = vmax.f32 %v304, 0.0
  %v595 = vmax.f32 %v306, 0.0
  %v596 = vmax.f32 %v357, 0.0
  %v597 = vmax.f32 %v359, 0.0
  %v598 = vmax.f32 %v410, 0.0
  %v599 = vmax.f32 %v412, 0.0
  %v600 = vmax.f32 %v463, 0.0
  %v601 = vmax.f32 %v465, 0.0
  %v602 = vmax.f32 %v516, 0.0
  %v603 = vmax.f32 %v518, 0.0
  %v604 = vmax.f32 %v568, 0.0
  %v605 = vmax.f32 %v257, 0.0
  %v606 = vmax.f32 %v259, 0.0
  %v607 = vmax.f32 %v310, 0.0
  %v608 = vmax.f32 %v312, 0.0
  %v609 = vmax.f32 %v363, 0.0
  %v610 = vmax.f32 %v365, 0.0
  %v611 = vmax.f32 %v416, 0.0
  %v612 = vmax.f32 %v418, 0.0
  %v613 = vmax.f32 %v469, 0.0
  %v614 = vmax.f32 %v471, 0.0
  %v615 = vmax.f32 %v522, 0.0
  %v616 = vmax.f32 %v524, 0.0
  %v617 = vmax.f32 %v573, 0.0
  %v618 = vmax.f32 %v261, 0.0
  %v619 = vmax.f32 %v263, 0.0
  %v620 = vmax.f32 %v314, 0.0
  %v621 = vmax.f32 %v316, 0.0
  %v622 = vmax.f32 %v367, 0.0
  %v623 = vmax.f32 %v369, 0.0
  %v624 = vmax.f32 %v420, 0.0
  %v625 = vmax.f32 %v422, 0.0
  %v626 = vmax.f32 %v473, 0.0
  %v627 = vmax.f32 %v475, 0.0
  %v628 = vmax.f32 %v526, 0.0
  %v629 = vmax.f32 %v528, 0.0
  %v630 = vmax.f32 %v576, 0.0
  %v631 = vpack.c.bf16 %v592, %v579
  %v632 = vpack.c.bf16 %v593, %v580
  %v633 = vpack.c.bf16 %v594, %v581
  %v634 = vpack.c.bf16 %v595, %v582
  %v635 = vpack.c.bf16 %v596, %v583
  %v636 = vpack.c.bf16 %v597, %v584
  %v637 = vpack.c.bf16 %v598, %v585
  %v638 = vpack.c.bf16 %v599, %v586
  %v639 = vpack.c.bf16 %v600, %v587
  %v640 = vpack.c.bf16 %v601, %v588
  %v641 = vpack.c.bf16 %v602, %v589
  %v642 = vpack.c.bf16 %v603, %v590
  %v643 = vpack.c.bf16 %v604, %v591
  %v644 = vpack.c.bf16 %v618, %v605
  %v645 = vpack.c.bf16 %v619, %v606
  %v646 = vpack.c.bf16 %v620, %v607
  %v647 = vpack.c.bf16 %v621, %v608
  %v648 = vpack.c.bf16 %v622, %v609
  %v649 = vpack.c.bf16 %v623, %v610
  %v650 = vpack.c.bf16 %v624, %v611
  %v651 = vpack.c.bf16 %v625, %v612
  %v652 = vpack.c.bf16 %v626, %v613
  %v653 = vpack.c.bf16 %v627, %v614
  %v654 = vpack.c.bf16 %v628, %v615
  %v655 = vpack.c.bf16 %v629, %v616
  %v656 = vpack.c.bf16 %v630, %v617
  %v657 = vld [vmem:[%s3] sm:$0xff]
  %v658 = vld [vmem:[%s3 + $0x8] sm:$0xff]
  %v659 = vld [vmem:[%s3 + $0x10] sm:$0xff]
  %v660 = vld [vmem:[%s3 + $0x18] sm:$0xff]
  %v661 = vld [vmem:[%s3 + $0x20] sm:$0xff]
  %v662 = vld [vmem:[%s3 + $0x28] sm:$0xff]
  %v663 = vld [vmem:[%s3 + $0x30] sm:$0xff]
  %v664 = vld [vmem:[%s3 + $0x38] sm:$0xff]
  %v665 = vld [vmem:[%s3 + $0x40] sm:$0xff]
  %v666 = vld [vmem:[%s3 + $0x48] sm:$0xff]
  %v667 = vld [vmem:[%s3 + $0x50] sm:$0xff]
  %v668 = vld [vmem:[%s3 + $0x58] sm:$0xff]
  %v669 = vld [vmem:[%s3 + $0x60] sm:$0xff]
  %v670 = vld [vmem:[%s3 + $0x68] sm:$0xff]
  %v671 = vld [vmem:[%s3 + $0x70] sm:$0xff]
  %v672 = vld [vmem:[%s3 + $0x78] sm:$0xff]
  %v673 = vld [vmem:[%s3 + $0x80] sm:$0xff]
  %v674 = vld [vmem:[%s3 + $0x88] sm:$0xff]
  %v675 = vld [vmem:[%s3 + $0x90] sm:$0xff]
  %v676 = vld [vmem:[%s3 + $0x98] sm:$0xff]
  %v677 = vld [vmem:[%s3 + $0xa0] sm:$0xff]
  %v678 = vld [vmem:[%s3 + $0xa8] sm:$0xff]
  %v679 = vld [vmem:[%s3 + $0xb0] sm:$0xff]
  %v680 = vld [vmem:[%s3 + $0xb8] sm:$0xff]
  %v681 = vld [vmem:[%s3 + $0xc0] sm:$0xff]
  %v682 = vld [vmem:[%s3 + $0xc8] sm:$0xff]
  %v683 = vld [vmem:[%s3 + $0xd0] sm:$0xff]
  %v684 = vld [vmem:[%s3 + $0xd8] sm:$0xff]
  %v685 = vld [vmem:[%s3 + $0xe0] sm:$0xff]
  %v686 = vld [vmem:[%s3 + $0xe8] sm:$0xff]
  %v687 = vld [vmem:[%s3 + $0xf0] sm:$0xff]
  %v688 = vld [vmem:[%s3 + $0xf8] sm:$0xff]
  %v689 = vld [vmem:[%s3 + $0x100] sm:$0xff]
  %v690 = vld [vmem:[%s3 + $0x108] sm:$0xff]
  %v691 = vld [vmem:[%s3 + $0x110] sm:$0xff]
  %v692 = vld [vmem:[%s3 + $0x118] sm:$0xff]
  %v693 = vld [vmem:[%s3 + $0x120] sm:$0xff]
  %v694 = vld [vmem:[%s3 + $0x128] sm:$0xff]
  %v695 = vld [vmem:[%s3 + $0x130] sm:$0xff]
  %v696 = vld [vmem:[%s3 + $0x138] sm:$0xff]
  %v697 = vld [vmem:[%s3 + $0x140] sm:$0xff]
  %v698 = vld [vmem:[%s3 + $0x148] sm:$0xff]
  %v699 = vld [vmem:[%s3 + $0x150] sm:$0xff]
  %v700 = vld [vmem:[%s3 + $0x158] sm:$0xff]
  %v701 = vld [vmem:[%s3 + $0x160] sm:$0xff]
  %v702 = vld [vmem:[%s3 + $0x168] sm:$0xff]
  %v703 = vld [vmem:[%s3 + $0x170] sm:$0xff]
  %v704 = vld [vmem:[%s3 + $0x178] sm:$0xff]
  %v705 = vld [vmem:[%s3 + $0x180] sm:$0xff]
  %v706 = vld [vmem:[%s3 + $0x188] sm:$0xff]
  %v707 = vld [vmem:[%s3 + $0x190] sm:$0xff]
  %v708 = vld [vmem:[%s3 + $0x198] sm:$0xff]
  %v709 = vld [vmem:[%s3 + $0x1a0] sm:$0xff]
  %v710 = vld [vmem:[%s3 + $0x1a8] sm:$0xff]
  %v711 = vld [vmem:[%s3 + $0x1b0] sm:$0xff]
  %v712 = vld [vmem:[%s3 + $0x1b8] sm:$0xff]
  %v713 = vld [vmem:[%s3 + $0x1c0] sm:$0xff]
  %v714 = vld [vmem:[%s3 + $0x1c8] sm:$0xff]
  %v715 = vld [vmem:[%s3 + $0x1d0] sm:$0xff]
  %v716 = vld [vmem:[%s3 + $0x1d8] sm:$0xff]
  %v717 = vld [vmem:[%s3 + $0x1e0] sm:$0xff]
  %v718 = vld [vmem:[%s3 + $0x1e8] sm:$0xff]
  %v719 = vld [vmem:[%s3 + $0x1f0] sm:$0xff]
  %v720 = vld [vmem:[%s3 + $0x1f8] sm:$0xff]
  %v721 = vld [vmem:[%s3 + $0x200] sm:$0xff]
  %v722 = vld [vmem:[%s3 + $0x208] sm:$0xff]
  %v723 = vld [vmem:[%s3 + $0x210] sm:$0xff]
  %v724 = vld [vmem:[%s3 + $0x218] sm:$0xff]
  %v725 = vld [vmem:[%s3 + $0x220] sm:$0xff]
  %v726 = vld [vmem:[%s3 + $0x228] sm:$0xff]
  %v727 = vld [vmem:[%s3 + $0x230] sm:$0xff]
  %v728 = vld [vmem:[%s3 + $0x238] sm:$0xff]
  %v729 = vld [vmem:[%s3 + $0x240] sm:$0xff]
  %v730 = vld [vmem:[%s3 + $0x248] sm:$0xff]
  %v731 = vld [vmem:[%s3 + $0x250] sm:$0xff]
  %v732 = vld [vmem:[%s3 + $0x258] sm:$0xff]
  %v733 = vld [vmem:[%s3 + $0x260] sm:$0xff]
  %v734 = vld [vmem:[%s3 + $0x268] sm:$0xff]
  %v735 = vld [vmem:[%s3 + $0x270] sm:$0xff]
  %v736 = vld [vmem:[%s3 + $0x278] sm:$0xff]
  %v737 = vld [vmem:[%s3 + $0x280] sm:$0xff]
  %v738 = vld [vmem:[%s3 + $0x288] sm:$0xff]
  %v739 = vld [vmem:[%s3 + $0x290] sm:$0xff]
  %v740 = vld [vmem:[%s3 + $0x298] sm:$0xff]
  %v741 = vld [vmem:[%s3 + $0x2a0] sm:$0xff]
  %v742 = vld [vmem:[%s3 + $0x2a8] sm:$0xff]
  %v743 = vld [vmem:[%s3 + $0x2b0] sm:$0xff]
  %v744 = vld [vmem:[%s3 + $0x2b8] sm:$0xff]
  %v745 = vld [vmem:[%s3 + $0x2c0] sm:$0xff]
  %v746 = vld [vmem:[%s3 + $0x2c8] sm:$0xff]
  %v747 = vld [vmem:[%s3 + $0x2d0] sm:$0xff]
  %v748 = vld [vmem:[%s3 + $0x2d8] sm:$0xff]
  %v749 = vld [vmem:[%s3 + $0x2e0] sm:$0xff]
  %v750 = vld [vmem:[%s3 + $0x2e8] sm:$0xff]
  %v751 = vld [vmem:[%s3 + $0x2f0] sm:$0xff]
  %v752 = vld [vmem:[%s3 + $0x2f8] sm:$0xff]
  %v753 = vld [vmem:[%s3 + $0x300] sm:$0xff]
  %v754 = vld [vmem:[%s3 + $0x308] sm:$0xff]
  %v755 = vld [vmem:[%s3 + $0x310] sm:$0xff]
  %v756 = vld [vmem:[%s3 + $0x318] sm:$0xff]
  %v757 = vld [vmem:[%s3 + $0x320] sm:$0xff]
  %v758 = vld [vmem:[%s3 + $0x328] sm:$0xff]
  %v759 = vld [vmem:[%s3 + $0x330] sm:$0xff]
  %v760 = vld [vmem:[%s3 + $0x338] sm:$0xff]
  %v761 = vld [vmem:[%s3 + $0x340] sm:$0xff]
  %v762 = vld [vmem:[%s3 + $0x348] sm:$0xff]
  %v763 = vld [vmem:[%s3 + $0x350] sm:$0xff]
  %v764 = vld [vmem:[%s3 + $0x358] sm:$0xff]
  %v765 = vld [vmem:[%s3 + $0x360] sm:$0xff]
  %v766 = vld [vmem:[%s3 + $0x368] sm:$0xff]
  %v767 = vld [vmem:[%s3 + $0x370] sm:$0xff]
  %v768 = vld [vmem:[%s3 + $0x378] sm:$0xff]
  %v769 = vld [vmem:[%s3 + $0x380] sm:$0xff]
  %v770 = vld [vmem:[%s3 + $0x388] sm:$0xff]
  %v771 = vld [vmem:[%s3 + $0x390] sm:$0xff]
  %v772 = vld [vmem:[%s3 + $0x398] sm:$0xff]
  %v773 = vld [vmem:[%s3 + $0x3a0] sm:$0xff]
  %v774 = vld [vmem:[%s3 + $0x3a8] sm:$0xff]
  %v775 = vld [vmem:[%s3 + $0x3b0] sm:$0xff]
  %v776 = vld [vmem:[%s3 + $0x3b8] sm:$0xff]
  %v777 = vld [vmem:[%s3 + $0x3c0] sm:$0xff]
  %v778 = vld [vmem:[%s3 + $0x3c8] sm:$0xff]
  %v779 = vld [vmem:[%s3 + $0x3d0] sm:$0xff]
  %v780 = vld [vmem:[%s3 + $0x3d8] sm:$0xff]
  %v781 = vld [vmem:[%s3 + $0x3e0] sm:$0xff]
  %v782 = vld [vmem:[%s3 + $0x3e8] sm:$0xff]
  %v783 = vld [vmem:[%s3 + $0x3f0] sm:$0xff]
  %v784 = vld [vmem:[%s3 + $0x3f8] sm:$0xff]
  %v785 = vld [vmem:[%s3 + $0x400] sm:$0xff]
  %v786 = vld [vmem:[%s3 + $0x408] sm:$0xff]
  %v787 = vld [vmem:[%s3 + $0x410] sm:$0xff]
  %v788 = vld [vmem:[%s3 + $0x418] sm:$0xff]
  %v789 = vld [vmem:[%s3 + $0x420] sm:$0xff]
  %v790 = vld [vmem:[%s3 + $0x428] sm:$0xff]
  %v791 = vld [vmem:[%s3 + $0x430] sm:$0xff]
  %v792 = vld [vmem:[%s3 + $0x438] sm:$0xff]
  %v793 = vld [vmem:[%s3 + $0x440] sm:$0xff]
  %v794 = vld [vmem:[%s3 + $0x448] sm:$0xff]
  %v795 = vld [vmem:[%s3 + $0x450] sm:$0xff]
  %v796 = vld [vmem:[%s3 + $0x458] sm:$0xff]
  %v797 = vld [vmem:[%s3 + $0x460] sm:$0xff]
  %v798 = vld [vmem:[%s3 + $0x468] sm:$0xff]
  %v799 = vld [vmem:[%s3 + $0x470] sm:$0xff]
  %v800 = vld [vmem:[%s3 + $0x478] sm:$0xff]
  %v801 = vld [vmem:[%s3 + $0x480] sm:$0xff]
  %v802 = vld [vmem:[%s3 + $0x488] sm:$0xff]
  %v803 = vld [vmem:[%s3 + $0x490] sm:$0xff]
  %v804 = vld [vmem:[%s3 + $0x498] sm:$0xff]
  %v805 = vld [vmem:[%s3 + $0x4a0] sm:$0xff]
  %v806 = vld [vmem:[%s3 + $0x4a8] sm:$0xff]
  %v807 = vld [vmem:[%s3 + $0x4b0] sm:$0xff]
  %v808 = vld [vmem:[%s3 + $0x4b8] sm:$0xff]
  %v809 = vld [vmem:[%s3 + $0x4c0] sm:$0xff]
  %v810 = vld [vmem:[%s3 + $0x4c8] sm:$0xff]
  %v811 = vld [vmem:[%s3 + $0x4d0] sm:$0xff]
  %v812 = vld [vmem:[%s3 + $0x4d8] sm:$0xff]
  %v813 = vld [vmem:[%s3 + $0x4e0] sm:$0xff]
  %v814 = vld [vmem:[%s3 + $0x4e8] sm:$0xff]
  %v815 = vld [vmem:[%s3 + $0x4f0] sm:$0xff]
  %v816 = vld [vmem:[%s3 + $0x4f8] sm:$0xff]
  %v817 = vld [vmem:[%s3 + $0x500] sm:$0xff]
  %v818 = vld [vmem:[%s3 + $0x508] sm:$0xff]
  %v819 = vld [vmem:[%s3 + $0x510] sm:$0xff]
  %v820 = vld [vmem:[%s3 + $0x518] sm:$0xff]
  %v821 = vld [vmem:[%s3 + $0x520] sm:$0xff]
  %v822 = vld [vmem:[%s3 + $0x528] sm:$0xff]
  %v823 = vld [vmem:[%s3 + $0x530] sm:$0xff]
  %v824 = vld [vmem:[%s3 + $0x538] sm:$0xff]
  %v825 = vld [vmem:[%s3 + $0x540] sm:$0xff]
  %v826 = vld [vmem:[%s3 + $0x548] sm:$0xff]
  %v827 = vld [vmem:[%s3 + $0x550] sm:$0xff]
  %v828 = vld [vmem:[%s3 + $0x558] sm:$0xff]
  %v829 = vld [vmem:[%s3 + $0x560] sm:$0xff]
  %v830 = vld [vmem:[%s3 + $0x568] sm:$0xff]
  %v831 = vld [vmem:[%s3 + $0x570] sm:$0xff]
  %v832 = vld [vmem:[%s3 + $0x578] sm:$0xff]
  %v833 = vld [vmem:[%s3 + $0x580] sm:$0xff]
  %v834 = vld [vmem:[%s3 + $0x588] sm:$0xff]
  %v835 = vld [vmem:[%s3 + $0x590] sm:$0xff]
  %v836 = vld [vmem:[%s3 + $0x598] sm:$0xff]
  %v837 = vld [vmem:[%s3 + $0x5a0] sm:$0xff]
  %v838 = vld [vmem:[%s3 + $0x5a8] sm:$0xff]
  %v839 = vld [vmem:[%s3 + $0x5b0] sm:$0xff]
  %v840 = vld [vmem:[%s3 + $0x5b8] sm:$0xff]
  %v841 = vld [vmem:[%s3 + $0x5c0] sm:$0xff]
  %v842 = vld [vmem:[%s3 + $0x5c8] sm:$0xff]
  %v843 = vld [vmem:[%s3 + $0x5d0] sm:$0xff]
  %v844 = vld [vmem:[%s3 + $0x5d8] sm:$0xff]
  %v845 = vld [vmem:[%s3 + $0x5e0] sm:$0xff]
  %v846 = vld [vmem:[%s3 + $0x5e8] sm:$0xff]
  %v847 = vld [vmem:[%s3 + $0x5f0] sm:$0xff]
  %v848 = vld [vmem:[%s3 + $0x5f8] sm:$0xff]
  %v849 = vld [vmem:[%s3 + $0x600] sm:$0xff]
  %v850 = vld [vmem:[%s3 + $0x608] sm:$0xff]
  %v851 = vld [vmem:[%s3 + $0x610] sm:$0xff]
  %v852 = vld [vmem:[%s3 + $0x618] sm:$0xff]
  %v853 = vld [vmem:[%s3 + $0x620] sm:$0xff]
  %v854 = vld [vmem:[%s3 + $0x628] sm:$0xff]
  %v1053 = vunpack.c.l.b16 %v657
  %v1054 = vunpack.c.h.b16 %v657
  %v1055 = vunpack.c.l.b16 %v658
  %v1056 = vunpack.c.h.b16 %v658
  %v1057 = vunpack.c.l.b16 %v659
  %v1058 = vunpack.c.h.b16 %v659
  %v1059 = vunpack.c.l.b16 %v660
  %v1060 = vunpack.c.h.b16 %v660
  %v1061 = vunpack.c.l.b16 %v661
  %v1062 = vunpack.c.h.b16 %v661
  %v1063 = vunpack.c.l.b16 %v662
  %v1064 = vunpack.c.h.b16 %v662
  %v1065 = vunpack.c.l.b16 %v663
  %v1066 = vunpack.c.h.b16 %v663
  %v1067 = vunpack.c.l.b16 %v664
  %v1068 = vunpack.c.h.b16 %v664
  %v1069 = vunpack.c.l.b16 %v665
  %v1070 = vunpack.c.h.b16 %v665
  %v1071 = vunpack.c.l.b16 %v666
  %v1072 = vunpack.c.h.b16 %v666
  %v1073 = vunpack.c.l.b16 %v667
  %v1074 = vunpack.c.h.b16 %v667
  %v1075 = vunpack.c.l.b16 %v668
  %v1076 = vunpack.c.h.b16 %v668
  %v1077 = vunpack.c.l.b16 %v669
  %v1078 = vunpack.c.h.b16 %v669
  %v1079 = vunpack.c.l.b16 %v670
  %v1080 = vunpack.c.h.b16 %v670
  %v1081 = vunpack.c.l.b16 %v671
  %v1082 = vunpack.c.h.b16 %v671
  %v1083 = vunpack.c.l.b16 %v672
  %v1084 = vunpack.c.h.b16 %v672
  %v1085 = vunpack.c.l.b16 %v673
  %v1086 = vunpack.c.h.b16 %v673
  %v1087 = vunpack.c.l.b16 %v674
  %v1088 = vunpack.c.h.b16 %v674
  %v1089 = vunpack.c.l.b16 %v675
  %v1090 = vunpack.c.h.b16 %v675
  %v1091 = vunpack.c.l.b16 %v676
  %v1092 = vunpack.c.h.b16 %v676
  %v1093 = vunpack.c.l.b16 %v677
  %v1094 = vunpack.c.h.b16 %v677
  %v1095 = vunpack.c.l.b16 %v678
  %v1096 = vunpack.c.h.b16 %v678
  %v1097 = vunpack.c.l.b16 %v679
  %v1098 = vunpack.c.h.b16 %v679
  %v1099 = vunpack.c.l.b16 %v680
  %v1100 = vunpack.c.h.b16 %v680
  %v1101 = vunpack.c.l.b16 %v681
  %v1102 = vunpack.c.h.b16 %v681
  %v1103 = vunpack.c.l.b16 %v682
  %v1104 = vunpack.c.h.b16 %v682
  %v1105 = vunpack.c.l.b16 %v683
  %v1106 = vunpack.c.h.b16 %v683
  %v1107 = vunpack.c.l.b16 %v684
  %v1108 = vunpack.c.h.b16 %v684
  %v1109 = vunpack.c.l.b16 %v685
  %v1110 = vunpack.c.h.b16 %v685
  %v1111 = vunpack.c.l.b16 %v686
  %v1112 = vunpack.c.h.b16 %v686
  %v1113 = vunpack.c.l.b16 %v687
  %v1114 = vunpack.c.h.b16 %v687
  %v1115 = vunpack.c.l.b16 %v688
  %v1116 = vunpack.c.h.b16 %v688
  %v1117 = vunpack.c.l.b16 %v689
  %v1118 = vunpack.c.h.b16 %v689
  %v1119 = vunpack.c.l.b16 %v690
  %v1120 = vunpack.c.h.b16 %v690
  %v1121 = vunpack.c.l.b16 %v691
  %v1122 = vunpack.c.h.b16 %v691
  %v1123 = vunpack.c.l.b16 %v692
  %v1124 = vunpack.c.h.b16 %v692
  %v1125 = vunpack.c.l.b16 %v693
  %v1126 = vunpack.c.h.b16 %v693
  %v1127 = vunpack.c.l.b16 %v694
  %v1128 = vunpack.c.h.b16 %v694
  %v1129 = vunpack.c.l.b16 %v695
  %v1130 = vunpack.c.h.b16 %v695
  %v1131 = vunpack.c.l.b16 %v696
  %v1132 = vunpack.c.h.b16 %v696
  %v1133 = vunpack.c.l.b16 %v697
  %v1134 = vunpack.c.h.b16 %v697
  %v1135 = vunpack.c.l.b16 %v698
  %v1136 = vunpack.c.h.b16 %v698
  %v1137 = vunpack.c.l.b16 %v699
  %v1138 = vunpack.c.h.b16 %v699
  %v1139 = vunpack.c.l.b16 %v700
  %v1140 = vunpack.c.h.b16 %v700
  %v1141 = vunpack.c.l.b16 %v701
  %v1142 = vunpack.c.h.b16 %v701
  %v1143 = vunpack.c.l.b16 %v702
  %v1144 = vunpack.c.h.b16 %v702
  %v1145 = vunpack.c.l.b16 %v703
  %v1146 = vunpack.c.h.b16 %v703
  %v1147 = vunpack.c.l.b16 %v704
  %v1148 = vunpack.c.h.b16 %v704
  %v1149 = vunpack.c.l.b16 %v705
  %v1150 = vunpack.c.h.b16 %v705
  %v1151 = vunpack.c.l.b16 %v706
  %v1152 = vunpack.c.h.b16 %v706
  %v1153 = vunpack.c.l.b16 %v707
  %v1154 = vunpack.c.h.b16 %v707
  %v1155 = vunpack.c.l.b16 %v708
  %v1156 = vunpack.c.h.b16 %v708
  %v1157 = vunpack.c.l.b16 %v709
  %v1158 = vunpack.c.h.b16 %v709
  %v1159 = vunpack.c.l.b16 %v710
  %v1160 = vunpack.c.h.b16 %v710
  %v1161 = vunpack.c.l.b16 %v711
  %v1162 = vunpack.c.h.b16 %v711
  %v1163 = vunpack.c.l.b16 %v712
  %v1164 = vunpack.c.h.b16 %v712
  %v1165 = vunpack.c.l.b16 %v713
  %v1166 = vunpack.c.h.b16 %v713
  %v1167 = vunpack.c.l.b16 %v714
  %v1168 = vunpack.c.h.b16 %v714
  %v1169 = vunpack.c.l.b16 %v715
  %v1170 = vunpack.c.h.b16 %v715
  %v1171 = vunpack.c.l.b16 %v716
  %v1172 = vunpack.c.h.b16 %v716
  %v1173 = vunpack.c.l.b16 %v717
  %v1174 = vunpack.c.h.b16 %v717
  %v1175 = vunpack.c.l.b16 %v718
  %v1176 = vunpack.c.h.b16 %v718
  %v1177 = vunpack.c.l.b16 %v719
  %v1178 = vunpack.c.h.b16 %v719
  %v1179 = vunpack.c.l.b16 %v720
  %v1180 = vunpack.c.h.b16 %v720
  %v1181 = vunpack.c.l.b16 %v721
  %v1182 = vunpack.c.h.b16 %v721
  %v1183 = vunpack.c.l.b16 %v722
  %v1184 = vunpack.c.h.b16 %v722
  %v1185 = vunpack.c.l.b16 %v723
  %v1186 = vunpack.c.h.b16 %v723
  %v1187 = vunpack.c.l.b16 %v724
  %v1188 = vunpack.c.h.b16 %v724
  %v1189 = vunpack.c.l.b16 %v725
  %v1190 = vunpack.c.h.b16 %v725
  %v1191 = vunpack.c.l.b16 %v726
  %v1192 = vunpack.c.h.b16 %v726
  %v1193 = vunpack.c.l.b16 %v727
  %v1194 = vunpack.c.h.b16 %v727
  %v1195 = vunpack.c.l.b16 %v728
  %v1196 = vunpack.c.h.b16 %v728
  %v1197 = vunpack.c.l.b16 %v729
  %v1198 = vunpack.c.h.b16 %v729
  %v1199 = vunpack.c.l.b16 %v730
  %v1200 = vunpack.c.h.b16 %v730
  %v1201 = vunpack.c.l.b16 %v731
  %v1202 = vunpack.c.h.b16 %v731
  %v1203 = vunpack.c.l.b16 %v732
  %v1204 = vunpack.c.h.b16 %v732
  %v1205 = vunpack.c.l.b16 %v733
  %v1206 = vunpack.c.h.b16 %v733
  %v1207 = vunpack.c.l.b16 %v734
  %v1208 = vunpack.c.h.b16 %v734
  %v1209 = vunpack.c.l.b16 %v735
  %v1210 = vunpack.c.h.b16 %v735
  %v1211 = vunpack.c.l.b16 %v736
  %v1212 = vunpack.c.h.b16 %v736
  %v1213 = vunpack.c.l.b16 %v737
  %v1214 = vunpack.c.h.b16 %v737
  %v1215 = vunpack.c.l.b16 %v738
  %v1216 = vunpack.c.h.b16 %v738
  %v1217 = vunpack.c.l.b16 %v739
  %v1218 = vunpack.c.h.b16 %v739
  %v1219 = vunpack.c.l.b16 %v740
  %v1220 = vunpack.c.h.b16 %v740
  %v1221 = vunpack.c.l.b16 %v741
  %v1222 = vunpack.c.h.b16 %v741
  %v1223 = vunpack.c.l.b16 %v742
  %v1224 = vunpack.c.h.b16 %v742
  %v1225 = vunpack.c.l.b16 %v743
  %v1226 = vunpack.c.h.b16 %v743
  %v1227 = vunpack.c.l.b16 %v744
  %v1228 = vunpack.c.h.b16 %v744
  %v1229 = vunpack.c.l.b16 %v745
  %v1230 = vunpack.c.h.b16 %v745
  %v1231 = vunpack.c.l.b16 %v746
  %v1232 = vunpack.c.h.b16 %v746
  %v1233 = vunpack.c.l.b16 %v747
  %v1234 = vunpack.c.h.b16 %v747
  %v1235 = vunpack.c.l.b16 %v748
  %v1236 = vunpack.c.h.b16 %v748
  %v1237 = vunpack.c.l.b16 %v749
  %v1238 = vunpack.c.h.b16 %v749
  %v1239 = vunpack.c.l.b16 %v750
  %v1240 = vunpack.c.h.b16 %v750
  %v1241 = vunpack.c.l.b16 %v751
  %v1242 = vunpack.c.h.b16 %v751
  %v1243 = vunpack.c.l.b16 %v752
  %v1244 = vunpack.c.h.b16 %v752
  %v1245 = vunpack.c.l.b16 %v753
  %v1246 = vunpack.c.h.b16 %v753
  %v1247 = vunpack.c.l.b16 %v754
  %v1248 = vunpack.c.h.b16 %v754
  %v1249 = vunpack.c.l.b16 %v755
  %v1250 = vunpack.c.h.b16 %v755
  %v1251 = vunpack.c.l.b16 %v756
  %v1252 = vunpack.c.h.b16 %v756
  %v1253 = vunpack.c.l.b16 %v757
  %v1254 = vunpack.c.h.b16 %v757
  %v1255 = vunpack.c.l.b16 %v758
  %v1256 = vunpack.c.h.b16 %v758
  %v1257 = vunpack.c.l.b16 %v759
  %v1258 = vunpack.c.h.b16 %v759
  %v1259 = vunpack.c.l.b16 %v760
  %v1260 = vunpack.c.h.b16 %v760
  %v1261 = vunpack.c.l.b16 %v761
  %v1262 = vunpack.c.h.b16 %v761
  %v1263 = vunpack.c.l.b16 %v762
  %v1264 = vunpack.c.h.b16 %v762
  %v1265 = vunpack.c.l.b16 %v763
  %v1266 = vunpack.c.h.b16 %v763
  %v1267 = vunpack.c.l.b16 %v764
  %v1268 = vunpack.c.h.b16 %v764
  %v1269 = vunpack.c.l.b16 %v765
  %v1270 = vunpack.c.h.b16 %v765
  %v1271 = vunpack.c.l.b16 %v766
  %v1272 = vunpack.c.h.b16 %v766
  %v1273 = vunpack.c.l.b16 %v767
  %v1274 = vunpack.c.h.b16 %v767
  %v1275 = vunpack.c.l.b16 %v768
  %v1276 = vunpack.c.h.b16 %v768
  %v1277 = vunpack.c.l.b16 %v769
  %v1278 = vunpack.c.h.b16 %v769
  %v1279 = vunpack.c.l.b16 %v770
  %v1280 = vunpack.c.h.b16 %v770
  %v1281 = vunpack.c.l.b16 %v771
  %v1282 = vunpack.c.h.b16 %v771
  %v1283 = vunpack.c.l.b16 %v772
  %v1284 = vunpack.c.h.b16 %v772
  %v1285 = vunpack.c.l.b16 %v773
  %v1286 = vunpack.c.h.b16 %v773
  %v1287 = vunpack.c.l.b16 %v774
  %v1288 = vunpack.c.h.b16 %v774
  %v1289 = vunpack.c.l.b16 %v775
  %v1290 = vunpack.c.h.b16 %v775
  %v1291 = vunpack.c.l.b16 %v776
  %v1292 = vunpack.c.h.b16 %v776
  %v1293 = vunpack.c.l.b16 %v777
  %v1294 = vunpack.c.h.b16 %v777
  %v1295 = vunpack.c.l.b16 %v778
  %v1296 = vunpack.c.h.b16 %v778
  %v1297 = vunpack.c.l.b16 %v779
  %v1298 = vunpack.c.h.b16 %v779
  %v1299 = vunpack.c.l.b16 %v780
  %v1300 = vunpack.c.h.b16 %v780
  %v1301 = vunpack.c.l.b16 %v781
  %v1302 = vunpack.c.h.b16 %v781
  %v1303 = vunpack.c.l.b16 %v782
  %v1304 = vunpack.c.h.b16 %v782
  %v1305 = vunpack.c.l.b16 %v783
  %v1306 = vunpack.c.h.b16 %v783
  %v1307 = vunpack.c.l.b16 %v784
  %v1308 = vunpack.c.h.b16 %v784
  %v1309 = vunpack.c.l.b16 %v785
  %v1310 = vunpack.c.h.b16 %v785
  %v1311 = vunpack.c.l.b16 %v786
  %v1312 = vunpack.c.h.b16 %v786
  %v1313 = vunpack.c.l.b16 %v787
  %v1314 = vunpack.c.h.b16 %v787
  %v1315 = vunpack.c.l.b16 %v788
  %v1316 = vunpack.c.h.b16 %v788
  %v1317 = vunpack.c.l.b16 %v789
  %v1318 = vunpack.c.h.b16 %v789
  %v1319 = vunpack.c.l.b16 %v790
  %v1320 = vunpack.c.h.b16 %v790
  %v1321 = vunpack.c.l.b16 %v791
  %v1322 = vunpack.c.h.b16 %v791
  %v1323 = vunpack.c.l.b16 %v792
  %v1324 = vunpack.c.h.b16 %v792
  %v1325 = vunpack.c.l.b16 %v793
  %v1326 = vunpack.c.h.b16 %v793
  %v1327 = vunpack.c.l.b16 %v794
  %v1328 = vunpack.c.h.b16 %v794
  %v1329 = vunpack.c.l.b16 %v795
  %v1330 = vunpack.c.h.b16 %v795
  %v1331 = vunpack.c.l.b16 %v796
  %v1332 = vunpack.c.h.b16 %v796
  %v1333 = vunpack.c.l.b16 %v797
  %v1334 = vunpack.c.h.b16 %v797
  %v1335 = vunpack.c.l.b16 %v798
  %v1336 = vunpack.c.h.b16 %v798
  %v1337 = vunpack.c.l.b16 %v799
  %v1338 = vunpack.c.h.b16 %v799
  %v1339 = vunpack.c.l.b16 %v800
  %v1340 = vunpack.c.h.b16 %v800
  %v1341 = vunpack.c.l.b16 %v801
  %v1342 = vunpack.c.h.b16 %v801
  %v1343 = vunpack.c.l.b16 %v802
  %v1344 = vunpack.c.h.b16 %v802
  %v1345 = vunpack.c.l.b16 %v803
  %v1346 = vunpack.c.h.b16 %v803
  %v1347 = vunpack.c.l.b16 %v804
  %v1348 = vunpack.c.h.b16 %v804
  %v1349 = vunpack.c.l.b16 %v805
  %v1350 = vunpack.c.h.b16 %v805
  %v1351 = vunpack.c.l.b16 %v806
  %v1352 = vunpack.c.h.b16 %v806
  %v1353 = vunpack.c.l.b16 %v807
  %v1354 = vunpack.c.h.b16 %v807
  %v1355 = vunpack.c.l.b16 %v808
  %v1356 = vunpack.c.h.b16 %v808
  %v1357 = vunpack.c.l.b16 %v809
  %v1358 = vunpack.c.h.b16 %v809
  %v1359 = vunpack.c.l.b16 %v810
  %v1360 = vunpack.c.h.b16 %v810
  %v1361 = vunpack.c.l.b16 %v811
  %v1362 = vunpack.c.h.b16 %v811
  %v1363 = vunpack.c.l.b16 %v812
  %v1364 = vunpack.c.h.b16 %v812
  %v1365 = vunpack.c.l.b16 %v813
  %v1366 = vunpack.c.h.b16 %v813
  %v1367 = vunpack.c.l.b16 %v814
  %v1368 = vunpack.c.h.b16 %v814
  %v1369 = vunpack.c.l.b16 %v815
  %v1370 = vunpack.c.h.b16 %v815
  %v1371 = vunpack.c.l.b16 %v816
  %v1372 = vunpack.c.h.b16 %v816
  %v1373 = vunpack.c.l.b16 %v817
  %v1374 = vunpack.c.h.b16 %v817
  %v1375 = vunpack.c.l.b16 %v818
  %v1376 = vunpack.c.h.b16 %v818
  %v1377 = vunpack.c.l.b16 %v819
  %v1378 = vunpack.c.h.b16 %v819
  %v1379 = vunpack.c.l.b16 %v820
  %v1380 = vunpack.c.h.b16 %v820
  %v1381 = vunpack.c.l.b16 %v821
  %v1382 = vunpack.c.h.b16 %v821
  %v1383 = vunpack.c.l.b16 %v822
  %v1384 = vunpack.c.h.b16 %v822
  %v1385 = vunpack.c.l.b16 %v823
  %v1386 = vunpack.c.h.b16 %v823
  %v1387 = vunpack.c.l.b16 %v824
  %v1388 = vunpack.c.h.b16 %v824
  %v1389 = vunpack.c.l.b16 %v825
  %v1390 = vunpack.c.h.b16 %v825
  %v1391 = vunpack.c.l.b16 %v826
  %v1392 = vunpack.c.h.b16 %v826
  %v1393 = vunpack.c.l.b16 %v827
  %v1394 = vunpack.c.h.b16 %v827
  %v1395 = vunpack.c.l.b16 %v828
  %v1396 = vunpack.c.h.b16 %v828
  %v1397 = vunpack.c.l.b16 %v829
  %v1398 = vunpack.c.h.b16 %v829
  %v1399 = vunpack.c.l.b16 %v830
  %v1400 = vunpack.c.h.b16 %v830
  %v1401 = vunpack.c.l.b16 %v831
  %v1402 = vunpack.c.h.b16 %v831
  %v1403 = vunpack.c.l.b16 %v832
  %v1404 = vunpack.c.h.b16 %v832
  %v1405 = vunpack.c.l.b16 %v833
  %v1406 = vunpack.c.h.b16 %v833
  %v1407 = vunpack.c.l.b16 %v834
  %v1408 = vunpack.c.h.b16 %v834
  %v1409 = vunpack.c.l.b16 %v835
  %v1410 = vunpack.c.h.b16 %v835
  %v1411 = vunpack.c.l.b16 %v836
  %v1412 = vunpack.c.h.b16 %v836
  %v1413 = vunpack.c.l.b16 %v837
  %v1414 = vunpack.c.h.b16 %v837
  %v1415 = vunpack.c.l.b16 %v838
  %v1416 = vunpack.c.h.b16 %v838
  %v1417 = vunpack.c.l.b16 %v839
  %v1418 = vunpack.c.h.b16 %v839
  %v1419 = vunpack.c.l.b16 %v840
  %v1420 = vunpack.c.h.b16 %v840
  %v1421 = vunpack.c.l.b16 %v841
  %v1422 = vunpack.c.h.b16 %v841
  %v1423 = vunpack.c.l.b16 %v842
  %v1424 = vunpack.c.h.b16 %v842
  %v1425 = vunpack.c.l.b16 %v843
  %v1426 = vunpack.c.h.b16 %v843
  %v1427 = vunpack.c.l.b16 %v844
  %v1428 = vunpack.c.h.b16 %v844
  %v1429 = vunpack.c.l.b16 %v845
  %v1430 = vunpack.c.h.b16 %v845
  %v1431 = vunpack.c.l.b16 %v846
  %v1432 = vunpack.c.h.b16 %v846
  %v1433 = vunpack.c.l.b16 %v847
  %v1434 = vunpack.c.h.b16 %v847
  %v1435 = vunpack.c.l.b16 %v848
  %v1436 = vunpack.c.h.b16 %v848
  %v1437 = vunpack.c.l.b16 %v849
  %v1438 = vunpack.c.h.b16 %v849
  %v1439 = vunpack.c.l.b16 %v850
  %v1440 = vunpack.c.h.b16 %v850
  %v1441 = vunpack.c.l.b16 %v851
  %v1442 = vunpack.c.h.b16 %v851
  %v1443 = vunpack.c.l.b16 %v852
  %v1444 = vunpack.c.h.b16 %v852
  %v1445 = vunpack.c.l.b16 %v853
  %v1446 = vunpack.c.h.b16 %v853
  %v1447 = vunpack.c.l.b16 %v854
  %v1448 = vunpack.c.h.b16 %v854
  %v1449 = vpack.c.b16 %v1055, %v1053
  %v1450 = vpack.c.b16 %v1056, %v1054
  %v1451 = vpack.c.b16 %v1059, %v1057
  %v1452 = vpack.c.b16 %v1060, %v1058
  %v1453 = vpack.c.b16 %v1063, %v1061
  %v1454 = vpack.c.b16 %v1064, %v1062
  %v1455 = vpack.c.b16 %v1067, %v1065
  %v1456 = vpack.c.b16 %v1068, %v1066
  %v1457 = vpack.c.b16 %v1071, %v1069
  %v1458 = vpack.c.b16 %v1072, %v1070
  %v1459 = vpack.c.b16 %v1075, %v1073
  %v1460 = vpack.c.b16 %v1076, %v1074
  %v1461 = vpack.c.b16 %v1079, %v1077
  %v1462 = vpack.c.b16 %v1080, %v1078
  %v1463 = vpack.c.b16 %v1083, %v1081
  %v1464 = vpack.c.b16 %v1084, %v1082
  %v1465 = vpack.c.b16 %v1087, %v1085
  %v1466 = vpack.c.b16 %v1088, %v1086
  %v1467 = vpack.c.b16 %v1091, %v1089
  %v1468 = vpack.c.b16 %v1092, %v1090
  %v1469 = vpack.c.b16 %v1095, %v1093
  %v1470 = vpack.c.b16 %v1096, %v1094
  %v1471 = vpack.c.b16 %v1099, %v1097
  %v1472 = vpack.c.b16 %v1100, %v1098
  %v1473 = vpack.c.b16 %v1103, %v1101
  %v1474 = vpack.c.b16 %v1104, %v1102
  %v1475 = vpack.c.b16 %v1107, %v1105
  %v1476 = vpack.c.b16 %v1108, %v1106
  %v1477 = vpack.c.b16 %v1111, %v1109
  %v1478 = vpack.c.b16 %v1112, %v1110
  %v1479 = vpack.c.b16 %v1115, %v1113
  %v1480 = vpack.c.b16 %v1116, %v1114
  %v1481 = vpack.c.b16 %v1119, %v1117
  %v1482 = vpack.c.b16 %v1120, %v1118
  %v1483 = vpack.c.b16 %v1123, %v1121
  %v1484 = vpack.c.b16 %v1124, %v1122
  %v1485 = vpack.c.b16 %v1127, %v1125
  %v1486 = vpack.c.b16 %v1128, %v1126
  %v1487 = vpack.c.b16 %v1131, %v1129
  %v1488 = vpack.c.b16 %v1132, %v1130
  %v1489 = vpack.c.b16 %v1135, %v1133
  %v1490 = vpack.c.b16 %v1136, %v1134
  %v1491 = vpack.c.b16 %v1139, %v1137
  %v1492 = vpack.c.b16 %v1140, %v1138
  %v1493 = vpack.c.b16 %v1143, %v1141
  %v1494 = vpack.c.b16 %v1144, %v1142
  %v1495 = vpack.c.b16 %v1147, %v1145
  %v1496 = vpack.c.b16 %v1148, %v1146
  %v1497 = vpack.c.b16 %v1151, %v1149
  %v1498 = vpack.c.b16 %v1152, %v1150
  %v1499 = vpack.c.b16 %v1155, %v1153
  %v1500 = vpack.c.b16 %v1156, %v1154
  %v1501 = vpack.c.b16 %v1159, %v1157
  %v1502 = vpack.c.b16 %v1160, %v1158
  %v1503 = vpack.c.b16 %v1163, %v1161
  %v1504 = vpack.c.b16 %v1164, %v1162
  %v1505 = vpack.c.b16 %v1167, %v1165
  %v1506 = vpack.c.b16 %v1168, %v1166
  %v1507 = vpack.c.b16 %v1171, %v1169
  %v1508 = vpack.c.b16 %v1172, %v1170
  %v1509 = vpack.c.b16 %v1175, %v1173
  %v1510 = vpack.c.b16 %v1176, %v1174
  %v1511 = vpack.c.b16 %v1179, %v1177
  %v1512 = vpack.c.b16 %v1180, %v1178
  %v1513 = vpack.c.b16 %v1183, %v1181
  %v1514 = vpack.c.b16 %v1184, %v1182
  %v1515 = vpack.c.b16 %v1187, %v1185
  %v1516 = vpack.c.b16 %v1188, %v1186
  %v1517 = vpack.c.b16 %v1191, %v1189
  %v1518 = vpack.c.b16 %v1192, %v1190
  %v1519 = vpack.c.b16 %v1195, %v1193
  %v1520 = vpack.c.b16 %v1196, %v1194
  %v1521 = vpack.c.b16 %v1199, %v1197
  %v1522 = vpack.c.b16 %v1200, %v1198
  %v1523 = vpack.c.b16 %v1203, %v1201
  %v1524 = vpack.c.b16 %v1204, %v1202
  %v1525 = vpack.c.b16 %v1207, %v1205
  %v1526 = vpack.c.b16 %v1208, %v1206
  %v1527 = vpack.c.b16 %v1211, %v1209
  %v1528 = vpack.c.b16 %v1212, %v1210
  %v1529 = vpack.c.b16 %v1215, %v1213
  %v1530 = vpack.c.b16 %v1216, %v1214
  %v1531 = vpack.c.b16 %v1219, %v1217
  %v1532 = vpack.c.b16 %v1220, %v1218
  %v1533 = vpack.c.b16 %v1223, %v1221
  %v1534 = vpack.c.b16 %v1224, %v1222
  %v1535 = vpack.c.b16 %v1227, %v1225
  %v1536 = vpack.c.b16 %v1228, %v1226
  %v1537 = vpack.c.b16 %v1231, %v1229
  %v1538 = vpack.c.b16 %v1232, %v1230
  %v1539 = vpack.c.b16 %v1235, %v1233
  %v1540 = vpack.c.b16 %v1236, %v1234
  %v1541 = vpack.c.b16 %v1239, %v1237
  %v1542 = vpack.c.b16 %v1240, %v1238
  %v1543 = vpack.c.b16 %v1243, %v1241
  %v1544 = vpack.c.b16 %v1244, %v1242
  %v1545 = vpack.c.b16 %v1247, %v1245
  %v1546 = vpack.c.b16 %v1248, %v1246
  %v1547 = vpack.c.b16 %v1251, %v1249
  %v1548 = vpack.c.b16 %v1252, %v1250
  %v1549 = vpack.c.b16 %v1255, %v1253
  %v1550 = vpack.c.b16 %v1256, %v1254
  %v1551 = vpack.c.b16 %v1259, %v1257
  %v1552 = vpack.c.b16 %v1260, %v1258
  %v1553 = vpack.c.b16 %v1263, %v1261
  %v1554 = vpack.c.b16 %v1264, %v1262
  %v1555 = vpack.c.b16 %v1267, %v1265
  %v1556 = vpack.c.b16 %v1268, %v1266
  %v1557 = vpack.c.b16 %v1271, %v1269
  %v1558 = vpack.c.b16 %v1272, %v1270
  %v1559 = vpack.c.b16 %v1275, %v1273
  %v1560 = vpack.c.b16 %v1276, %v1274
  %v1561 = vpack.c.b16 %v1279, %v1277
  %v1562 = vpack.c.b16 %v1280, %v1278
  %v1563 = vpack.c.b16 %v1283, %v1281
  %v1564 = vpack.c.b16 %v1284, %v1282
  %v1565 = vpack.c.b16 %v1287, %v1285
  %v1566 = vpack.c.b16 %v1288, %v1286
  %v1567 = vpack.c.b16 %v1291, %v1289
  %v1568 = vpack.c.b16 %v1292, %v1290
  %v1569 = vpack.c.b16 %v1295, %v1293
  %v1570 = vpack.c.b16 %v1296, %v1294
  %v1571 = vpack.c.b16 %v1299, %v1297
  %v1572 = vpack.c.b16 %v1300, %v1298
  %v1573 = vpack.c.b16 %v1303, %v1301
  %v1574 = vpack.c.b16 %v1304, %v1302
  %v1575 = vpack.c.b16 %v1307, %v1305
  %v1576 = vpack.c.b16 %v1308, %v1306
  %v1577 = vpack.c.b16 %v1311, %v1309
  %v1578 = vpack.c.b16 %v1312, %v1310
  %v1579 = vpack.c.b16 %v1315, %v1313
  %v1580 = vpack.c.b16 %v1316, %v1314
  %v1581 = vpack.c.b16 %v1319, %v1317
  %v1582 = vpack.c.b16 %v1320, %v1318
  %v1583 = vpack.c.b16 %v1323, %v1321
  %v1584 = vpack.c.b16 %v1324, %v1322
  %v1585 = vpack.c.b16 %v1327, %v1325
  %v1586 = vpack.c.b16 %v1328, %v1326
  %v1587 = vpack.c.b16 %v1331, %v1329
  %v1588 = vpack.c.b16 %v1332, %v1330
  %v1589 = vpack.c.b16 %v1335, %v1333
  %v1590 = vpack.c.b16 %v1336, %v1334
  %v1591 = vpack.c.b16 %v1339, %v1337
  %v1592 = vpack.c.b16 %v1340, %v1338
  %v1593 = vpack.c.b16 %v1343, %v1341
  %v1594 = vpack.c.b16 %v1344, %v1342
  %v1595 = vpack.c.b16 %v1347, %v1345
  %v1596 = vpack.c.b16 %v1348, %v1346
  %v1597 = vpack.c.b16 %v1351, %v1349
  %v1598 = vpack.c.b16 %v1352, %v1350
  %v1599 = vpack.c.b16 %v1355, %v1353
  %v1600 = vpack.c.b16 %v1356, %v1354
  %v1601 = vpack.c.b16 %v1359, %v1357
  %v1602 = vpack.c.b16 %v1360, %v1358
  %v1603 = vpack.c.b16 %v1363, %v1361
  %v1604 = vpack.c.b16 %v1364, %v1362
  %v1605 = vpack.c.b16 %v1367, %v1365
  %v1606 = vpack.c.b16 %v1368, %v1366
  %v1607 = vpack.c.b16 %v1371, %v1369
  %v1608 = vpack.c.b16 %v1372, %v1370
  %v1609 = vpack.c.b16 %v1375, %v1373
  %v1610 = vpack.c.b16 %v1376, %v1374
  %v1611 = vpack.c.b16 %v1379, %v1377
  %v1612 = vpack.c.b16 %v1380, %v1378
  %v1613 = vpack.c.b16 %v1383, %v1381
  %v1614 = vpack.c.b16 %v1384, %v1382
  %v1615 = vpack.c.b16 %v1387, %v1385
  %v1616 = vpack.c.b16 %v1388, %v1386
  %v1617 = vpack.c.b16 %v1391, %v1389
  %v1618 = vpack.c.b16 %v1392, %v1390
  %v1619 = vpack.c.b16 %v1395, %v1393
  %v1620 = vpack.c.b16 %v1396, %v1394
  %v1621 = vpack.c.b16 %v1399, %v1397
  %v1622 = vpack.c.b16 %v1400, %v1398
  %v1623 = vpack.c.b16 %v1403, %v1401
  %v1624 = vpack.c.b16 %v1404, %v1402
  %v1625 = vpack.c.b16 %v1407, %v1405
  %v1626 = vpack.c.b16 %v1408, %v1406
  %v1627 = vpack.c.b16 %v1411, %v1409
  %v1628 = vpack.c.b16 %v1412, %v1410
  %v1629 = vpack.c.b16 %v1415, %v1413
  %v1630 = vpack.c.b16 %v1416, %v1414
  %v1631 = vpack.c.b16 %v1419, %v1417
  %v1632 = vpack.c.b16 %v1420, %v1418
  %v1633 = vpack.c.b16 %v1423, %v1421
  %v1634 = vpack.c.b16 %v1424, %v1422
  %v1635 = vpack.c.b16 %v1427, %v1425
  %v1636 = vpack.c.b16 %v1428, %v1426
  %v1637 = vpack.c.b16 %v1431, %v1429
  %v1638 = vpack.c.b16 %v1432, %v1430
  %v1639 = vpack.c.b16 %v1435, %v1433
  %v1640 = vpack.c.b16 %v1436, %v1434
  %v1641 = vpack.c.b16 %v1439, %v1437
  %v1642 = vpack.c.b16 %v1440, %v1438
  %v1643 = vpack.c.b16 %v1443, %v1441
  %v1644 = vpack.c.b16 %v1444, %v1442
  %v1645 = vpack.c.b16 %v1447, %v1445
  %v1646 = vpack.c.b16 %v1448, %v1446
  %vm1845 = vcmask 392192
  %v1847 = vsel %vm1845, %v643, 0
  %v1850 = vsel %vm1845, %v656, 0
  %1852 = vmatprep.subr.bf16.mxu0 %v1450
  %1853 = vmatpush1.bf16.msra.mxu0 %v1449
  %1854 = vmatprep.subr.bf16.mxu0 %v1452
  %1855 = vmatpush1.bf16.msra.mxu0 %v1451
  %1856 = vmatprep.subr.bf16.mxu0 %v1454
  %1857 = vmatpush1.bf16.msra.mxu0 %v1453
  %1858 = vmatprep.subr.bf16.mxu0 %v1456
  %1859 = vmatpush1.bf16.msra.mxu0 %v1455
  %1860 = vmatprep.subr.bf16.mxu0 %v1458
  %1861 = vmatpush1.bf16.msra.mxu0 %v1457
  %1862 = vmatprep.subr.bf16.mxu0 %v1460
  %1863 = vmatpush1.bf16.msra.mxu0 %v1459
  %1864 = vmatprep.subr.bf16.mxu0 %v1462
  %1865 = vmatpush1.bf16.msra.mxu0 %v1461
  %1866 = vmatprep.subr.bf16.mxu0 %v1464
  %1867 = vmatpush1.bf16.msra.mxu0 %v1463
  %1868 = vmatprep.subr.bf16.mxu0 %v1466
  %1869 = vmatpush1.bf16.msra.mxu0 %v1465
  %1870 = vmatprep.subr.bf16.mxu0 %v1468
  %1871 = vmatpush1.bf16.msra.mxu0 %v1467
  %1872 = vmatprep.subr.bf16.mxu0 %v1470
  %1873 = vmatpush1.bf16.msra.mxu0 %v1469
  %1874 = vmatprep.subr.bf16.mxu0 %v1472
  %1875 = vmatpush1.bf16.msra.mxu0 %v1471
  %1876 = vmatprep.subr.bf16.mxu0 %v1474
  %1877 = vmatpush1.bf16.msra.mxu0 %v1473
  %1878 = vmatprep.subr.bf16.mxu0 %v1476
  %1879 = vmatpush1.bf16.msra.mxu0 %v1475
  %1880 = vmatprep.subr.bf16.mxu0 %v1478
  %1881 = vmatpush1.bf16.msra.mxu0 %v1477
  %1882 = vmatprep.subr.bf16.mxu0 %v1480
  %1883 = vmatpush1.bf16.msra.mxu0 %v1479
  %1884 = vmatprep.mubr.bf16.mxu0 %v632
  %1885 = vmatmul.mubr.bf16.gmra.mrb[0].mxu0 %v631
  %v1886 = vpop.f32.mrb[0].mxu0
  %v1887 = vadd.f32 0.0, %v1886
  %v1888 = vpop.f32.mrb[0].mxu0
  %v1889 = vadd.f32 0.0, %v1888
  %v1890 = vpop.f32.mrb[0].mxu0
  %v1891 = vadd.f32 0.0, %v1890
  %v1892 = vpop.f32.mrb[0].mxu0
  %v1893 = vadd.f32 0.0, %v1892
  %1894 = vmatprep.mubr.bf16.mxu0 %v645
  %1895 = vmatmul.mubr.bf16.gmra.mrb[0].mxu0 %v644
  %v1896 = vpop.f32.mrb[0].mxu0
  %v1897 = vadd.f32 0.0, %v1896
  %v1898 = vpop.f32.mrb[0].mxu0
  %v1899 = vadd.f32 0.0, %v1898
  %v1900 = vpop.f32.mrb[0].mxu0
  %v1901 = vadd.f32 0.0, %v1900
  %v1902 = vpop.f32.mrb[0].mxu0
  %v1903 = vadd.f32 0.0, %v1902
  %1904 = vdwg.mxu0
  %1905 = vmatprep.subr.bf16.mxu0 %v1482
  %1906 = vmatpush1.bf16.msra.mxu0 %v1481
  %1907 = vmatprep.subr.bf16.mxu0 %v1484
  %1908 = vmatpush1.bf16.msra.mxu0 %v1483
  %1909 = vmatprep.subr.bf16.mxu0 %v1486
  %1910 = vmatpush1.bf16.msra.mxu0 %v1485
  %1911 = vmatprep.subr.bf16.mxu0 %v1488
  %1912 = vmatpush1.bf16.msra.mxu0 %v1487
  %1913 = vmatprep.subr.bf16.mxu0 %v1490
  %1914 = vmatpush1.bf16.msra.mxu0 %v1489
  %1915 = vmatprep.subr.bf16.mxu0 %v1492
  %1916 = vmatpush1.bf16.msra.mxu0 %v1491
  %1917 = vmatprep.subr.bf16.mxu0 %v1494
  %1918 = vmatpush1.bf16.msra.mxu0 %v1493
  %1919 = vmatprep.subr.bf16.mxu0 %v1496
  %1920 = vmatpush1.bf16.msra.mxu0 %v1495
  %1921 = vmatprep.subr.bf16.mxu0 %v1498
  %1922 = vmatpush1.bf16.msra.mxu0 %v1497
  %1923 = vmatprep.subr.bf16.mxu0 %v1500
  %1924 = vmatpush1.bf16.msra.mxu0 %v1499
  %1925 = vmatprep.subr.bf16.mxu0 %v1502
  %1926 = vmatpush1.bf16.msra.mxu0 %v1501
  %1927 = vmatprep.subr.bf16.mxu0 %v1504
  %1928 = vmatpush1.bf16.msra.mxu0 %v1503
  %1929 = vmatprep.subr.bf16.mxu0 %v1506
  %1930 = vmatpush1.bf16.msra.mxu0 %v1505
  %1931 = vmatprep.subr.bf16.mxu0 %v1508
  %1932 = vmatpush1.bf16.msra.mxu0 %v1507
  %1933 = vmatprep.subr.bf16.mxu0 %v1510
  %1934 = vmatpush1.bf16.msra.mxu0 %v1509
  %1935 = vmatprep.subr.bf16.mxu0 %v1512
  %1936 = vmatpush1.bf16.msra.mxu0 %v1511
  %1937 = vmatprep.mubr.bf16.mxu0 %v634
  %1938 = vmatmul.mubr.bf16.gmra.mrb[0].mxu0 %v633
  %v1939 = vpop.f32.mrb[0].mxu0
  %v1940 = vadd.f32 %v1887, %v1939
  %v1941 = vpop.f32.mrb[0].mxu0
  %v1942 = vadd.f32 %v1889, %v1941
  %v1943 = vpop.f32.mrb[0].mxu0
  %v1944 = vadd.f32 %v1891, %v1943
  %v1945 = vpop.f32.mrb[0].mxu0
  %v1946 = vadd.f32 %v1893, %v1945
  %1947 = vmatprep.mubr.bf16.mxu0 %v647
  %1948 = vmatmul.mubr.bf16.gmra.mrb[0].mxu0 %v646
  %v1949 = vpop.f32.mrb[0].mxu0
  %v1950 = vadd.f32 %v1897, %v1949
  %v1951 = vpop.f32.mrb[0].mxu0
  %v1952 = vadd.f32 %v1899, %v1951
  %v1953 = vpop.f32.mrb[0].mxu0
  %v1954 = vadd.f32 %v1901, %v1953
  %v1955 = vpop.f32.mrb[0].mxu0
  %v1956 = vadd.f32 %v1903, %v1955
  %1957 = vdwg.mxu0
  %1958 = vmatprep.subr.bf16.mxu0 %v1514
  %1959 = vmatpush1.bf16.msra.mxu0 %v1513
  %1960 = vmatprep.subr.bf16.mxu0 %v1516
  %1961 = vmatpush1.bf16.msra.mxu0 %v1515
  %1962 = vmatprep.subr.bf16.mxu0 %v1518
  %1963 = vmatpush1.bf16.msra.mxu0 %v1517
  %1964 = vmatprep.subr.bf16.mxu0 %v1520
  %1965 = vmatpush1.bf16.msra.mxu0 %v1519
  %1966 = vmatprep.subr.bf16.mxu0 %v1522
  %1967 = vmatpush1.bf16.msra.mxu0 %v1521
  %1968 = vmatprep.subr.bf16.mxu0 %v1524
  %1969 = vmatpush1.bf16.msra.mxu0 %v1523
  %1970 = vmatprep.subr.bf16.mxu0 %v1526
  %1971 = vmatpush1.bf16.msra.mxu0 %v1525
  %1972 = vmatprep.subr.bf16.mxu0 %v1528
  %1973 = vmatpush1.bf16.msra.mxu0 %v1527
  %1974 = vmatprep.subr.bf16.mxu0 %v1530
  %1975 = vmatpush1.bf16.msra.mxu0 %v1529
  %1976 = vmatprep.subr.bf16.mxu0 %v1532
  %1977 = vmatpush1.bf16.msra.mxu0 %v1531
  %1978 = vmatprep.subr.bf16.mxu0 %v1534
  %1979 = vmatpush1.bf16.msra.mxu0 %v1533
  %1980 = vmatprep.subr.bf16.mxu0 %v1536
  %1981 = vmatpush1.bf16.msra.mxu0 %v1535
  %1982 = vmatprep.subr.bf16.mxu0 %v1538
  %1983 = vmatpush1.bf16.msra.mxu0 %v1537
  %1984 = vmatprep.subr.bf16.mxu0 %v1540
  %1985 = vmatpush1.bf16.msra.mxu0 %v1539
  %1986 = vmatprep.subr.bf16.mxu0 %v1542
  %1987 = vmatpush1.bf16.msra.mxu0 %v1541
  %1988 = vmatprep.subr.bf16.mxu0 %v1544
  %1989 = vmatpush1.bf16.msra.mxu0 %v1543
  %1990 = vmatprep.mubr.bf16.mxu0 %v636
  %1991 = vmatmul.mubr.bf16.gmra.mrb[0].mxu0 %v635
  %v1992 = vpop.f32.mrb[0].mxu0
  %v1993 = vadd.f32 %v1940, %v1992
  %v1994 = vpop.f32.mrb[0].mxu0
  %v1995 = vadd.f32 %v1942, %v1994
  %v1996 = vpop.f32.mrb[0].mxu0
  %v1997 = vadd.f32 %v1944, %v1996
  %v1998 = vpop.f32.mrb[0].mxu0
  %v1999 = vadd.f32 %v1946, %v1998
  %2000 = vmatprep.mubr.bf16.mxu0 %v649
  %2001 = vmatmul.mubr.bf16.gmra.mrb[0].mxu0 %v648
  %v2002 = vpop.f32.mrb[0].mxu0
  %v2003 = vadd.f32 %v1950, %v2002
  %v2004 = vpop.f32.mrb[0].mxu0
  %v2005 = vadd.f32 %v1952, %v2004
  %v2006 = vpop.f32.mrb[0].mxu0
  %v2007 = vadd.f32 %v1954, %v2006
  %v2008 = vpop.f32.mrb[0].mxu0
  %v2009 = vadd.f32 %v1956, %v2008
  %2010 = vdwg.mxu0
  %2011 = vmatprep.subr.bf16.mxu0 %v1546
  %2012 = vmatpush1.bf16.msra.mxu0 %v1545
  %2013 = vmatprep.subr.bf16.mxu0 %v1548
  %2014 = vmatpush1.bf16.msra.mxu0 %v1547
  %2015 = vmatprep.subr.bf16.mxu0 %v1550
  %2016 = vmatpush1.bf16.msra.mxu0 %v1549
  %2017 = vmatprep.subr.bf16.mxu0 %v1552
  %2018 = vmatpush1.bf16.msra.mxu0 %v1551
  %2019 = vmatprep.subr.bf16.mxu0 %v1554
  %2020 = vmatpush1.bf16.msra.mxu0 %v1553
  %2021 = vmatprep.subr.bf16.mxu0 %v1556
  %2022 = vmatpush1.bf16.msra.mxu0 %v1555
  %2023 = vmatprep.subr.bf16.mxu0 %v1558
  %2024 = vmatpush1.bf16.msra.mxu0 %v1557
  %2025 = vmatprep.subr.bf16.mxu0 %v1560
  %2026 = vmatpush1.bf16.msra.mxu0 %v1559
  %2027 = vmatprep.subr.bf16.mxu0 %v1562
  %2028 = vmatpush1.bf16.msra.mxu0 %v1561
  %2029 = vmatprep.subr.bf16.mxu0 %v1564
  %2030 = vmatpush1.bf16.msra.mxu0 %v1563
  %2031 = vmatprep.subr.bf16.mxu0 %v1566
  %2032 = vmatpush1.bf16.msra.mxu0 %v1565
  %2033 = vmatprep.subr.bf16.mxu0 %v1568
  %2034 = vmatpush1.bf16.msra.mxu0 %v1567
  %2035 = vmatprep.subr.bf16.mxu0 %v1570
  %2036 = vmatpush1.bf16.msra.mxu0 %v1569
  %2037 = vmatprep.subr.bf16.mxu0 %v1572
  %2038 = vmatpush1.bf16.msra.mxu0 %v1571
  %2039 = vmatprep.subr.bf16.mxu0 %v1574
  %2040 = vmatpush1.bf16.msra.mxu0 %v1573
  %2041 = vmatprep.subr.bf16.mxu0 %v1576
  %2042 = vmatpush1.bf16.msra.mxu0 %v1575
  %2043 = vmatprep.mubr.bf16.mxu0 %v638
  %2044 = vmatmul.mubr.bf16.gmra.mrb[0].mxu0 %v637
  %v2045 = vpop.f32.mrb[0].mxu0
  %v2046 = vadd.f32 %v1993, %v2045
  %v2047 = vpop.f32.mrb[0].mxu0
  %v2048 = vadd.f32 %v1995, %v2047
  %v2049 = vpop.f32.mrb[0].mxu0
  %v2050 = vadd.f32 %v1997, %v2049
  %v2051 = vpop.f32.mrb[0].mxu0
  %v2052 = vadd.f32 %v1999, %v2051
  %2053 = vmatprep.mubr.bf16.mxu0 %v651
  %2054 = vmatmul.mubr.bf16.gmra.mrb[0].mxu0 %v650
  %v2055 = vpop.f32.mrb[0].mxu0
  %v2056 = vadd.f32 %v2003, %v2055
  %v2057 = vpop.f32.mrb[0].mxu0
  %v2058 = vadd.f32 %v2005, %v2057
  %v2059 = vpop.f32.mrb[0].mxu0
  %v2060 = vadd.f32 %v2007, %v2059
  %v2061 = vpop.f32.mrb[0].mxu0
  %v2062 = vadd.f32 %v2009, %v2061
  %2063 = vdwg.mxu0
  %2064 = vmatprep.subr.bf16.mxu0 %v1578
  %2065 = vmatpush1.bf16.msra.mxu0 %v1577
  %2066 = vmatprep.subr.bf16.mxu0 %v1580
  %2067 = vmatpush1.bf16.msra.mxu0 %v1579
  %2068 = vmatprep.subr.bf16.mxu0 %v1582
  %2069 = vmatpush1.bf16.msra.mxu0 %v1581
  %2070 = vmatprep.subr.bf16.mxu0 %v1584
  %2071 = vmatpush1.bf16.msra.mxu0 %v1583
  %2072 = vmatprep.subr.bf16.mxu0 %v1586
  %2073 = vmatpush1.bf16.msra.mxu0 %v1585
  %2074 = vmatprep.subr.bf16.mxu0 %v1588
  %2075 = vmatpush1.bf16.msra.mxu0 %v1587
  %2076 = vmatprep.subr.bf16.mxu0 %v1590
  %2077 = vmatpush1.bf16.msra.mxu0 %v1589
  %2078 = vmatprep.subr.bf16.mxu0 %v1592
  %2079 = vmatpush1.bf16.msra.mxu0 %v1591
  %2080 = vmatprep.subr.bf16.mxu0 %v1594
  %2081 = vmatpush1.bf16.msra.mxu0 %v1593
  %2082 = vmatprep.subr.bf16.mxu0 %v1596
  %2083 = vmatpush1.bf16.msra.mxu0 %v1595
  %2084 = vmatprep.subr.bf16.mxu0 %v1598
  %2085 = vmatpush1.bf16.msra.mxu0 %v1597
  %2086 = vmatprep.subr.bf16.mxu0 %v1600
  %2087 = vmatpush1.bf16.msra.mxu0 %v1599
  %2088 = vmatprep.subr.bf16.mxu0 %v1602
  %2089 = vmatpush1.bf16.msra.mxu0 %v1601
  %2090 = vmatprep.subr.bf16.mxu0 %v1604
  %2091 = vmatpush1.bf16.msra.mxu0 %v1603
  %2092 = vmatprep.subr.bf16.mxu0 %v1606
  %2093 = vmatpush1.bf16.msra.mxu0 %v1605
  %2094 = vmatprep.subr.bf16.mxu0 %v1608
  %2095 = vmatpush1.bf16.msra.mxu0 %v1607
  %2096 = vmatprep.mubr.bf16.mxu0 %v640
  %2097 = vmatmul.mubr.bf16.gmra.mrb[0].mxu0 %v639
  %v2098 = vpop.f32.mrb[0].mxu0
  %v2099 = vadd.f32 %v2046, %v2098
  %v2100 = vpop.f32.mrb[0].mxu0
  %v2101 = vadd.f32 %v2048, %v2100
  %v2102 = vpop.f32.mrb[0].mxu0
  %v2103 = vadd.f32 %v2050, %v2102
  %v2104 = vpop.f32.mrb[0].mxu0
  %v2105 = vadd.f32 %v2052, %v2104
  %2106 = vmatprep.mubr.bf16.mxu0 %v653
  %2107 = vmatmul.mubr.bf16.gmra.mrb[0].mxu0 %v652
  %v2108 = vpop.f32.mrb[0].mxu0
  %v2109 = vadd.f32 %v2056, %v2108
  %v2110 = vpop.f32.mrb[0].mxu0
  %v2111 = vadd.f32 %v2058, %v2110
  %v2112 = vpop.f32.mrb[0].mxu0
  %v2113 = vadd.f32 %v2060, %v2112
  %v2114 = vpop.f32.mrb[0].mxu0
  %v2115 = vadd.f32 %v2062, %v2114
  %2116 = vdwg.mxu0
  %2117 = vmatprep.subr.bf16.mxu0 %v1610
  %2118 = vmatpush1.bf16.msra.mxu0 %v1609
  %2119 = vmatprep.subr.bf16.mxu0 %v1612
  %2120 = vmatpush1.bf16.msra.mxu0 %v1611
  %2121 = vmatprep.subr.bf16.mxu0 %v1614
  %2122 = vmatpush1.bf16.msra.mxu0 %v1613
  %2123 = vmatprep.subr.bf16.mxu0 %v1616
  %2124 = vmatpush1.bf16.msra.mxu0 %v1615
  %2125 = vmatprep.subr.bf16.mxu0 %v1618
  %2126 = vmatpush1.bf16.msra.mxu0 %v1617
  %2127 = vmatprep.subr.bf16.mxu0 %v1620
  %2128 = vmatpush1.bf16.msra.mxu0 %v1619
  %2129 = vmatprep.subr.bf16.mxu0 %v1622
  %2130 = vmatpush1.bf16.msra.mxu0 %v1621
  %2131 = vmatprep.subr.bf16.mxu0 %v1624
  %2132 = vmatpush1.bf16.msra.mxu0 %v1623
  %2133 = vmatprep.subr.bf16.mxu0 %v1626
  %2134 = vmatpush1.bf16.msra.mxu0 %v1625
  %2135 = vmatprep.subr.bf16.mxu0 %v1628
  %2136 = vmatpush1.bf16.msra.mxu0 %v1627
  %2137 = vmatprep.subr.bf16.mxu0 %v1630
  %2138 = vmatpush1.bf16.msra.mxu0 %v1629
  %2139 = vmatprep.subr.bf16.mxu0 %v1632
  %2140 = vmatpush1.bf16.msra.mxu0 %v1631
  %2141 = vmatprep.subr.bf16.mxu0 %v1634
  %2142 = vmatpush1.bf16.msra.mxu0 %v1633
  %2143 = vmatprep.subr.bf16.mxu0 %v1636
  %2144 = vmatpush1.bf16.msra.mxu0 %v1635
  %2145 = vmatprep.subr.bf16.mxu0 %v1638
  %2146 = vmatpush1.bf16.msra.mxu0 %v1637
  %2147 = vmatprep.subr.bf16.mxu0 %v1640
  %2148 = vmatpush1.bf16.msra.mxu0 %v1639
  %2149 = vmatprep.mubr.bf16.mxu0 %v642
  %2150 = vmatmul.mubr.bf16.gmra.mrb[0].mxu0 %v641
  %v2151 = vpop.f32.mrb[0].mxu0
  %v2152 = vadd.f32 %v2099, %v2151
  %v2153 = vpop.f32.mrb[0].mxu0
  %v2154 = vadd.f32 %v2101, %v2153
  %v2155 = vpop.f32.mrb[0].mxu0
  %v2156 = vadd.f32 %v2103, %v2155
  %v2157 = vpop.f32.mrb[0].mxu0
  %v2158 = vadd.f32 %v2105, %v2157
  %2159 = vmatprep.mubr.bf16.mxu0 %v655
  %2160 = vmatmul.mubr.bf16.gmra.mrb[0].mxu0 %v654
  %v2161 = vpop.f32.mrb[0].mxu0
  %v2162 = vadd.f32 %v2109, %v2161
  %v2163 = vpop.f32.mrb[0].mxu0
  %v2164 = vadd.f32 %v2111, %v2163
  %v2165 = vpop.f32.mrb[0].mxu0
  %v2166 = vadd.f32 %v2113, %v2165
  %v2167 = vpop.f32.mrb[0].mxu0
  %v2168 = vadd.f32 %v2115, %v2167
  %2169 = vdwg.mxu0
  %2170 = vmatprep.subr.bf16.mxu0 %v1642
  %2171 = vmatpush1.bf16.msra.mxu0 %v1641
  %2172 = vmatprep.subr.bf16.mxu0 %v1644
  %2173 = vmatpush1.bf16.msra.mxu0 %v1643
  %2174 = vmatprep.subr.bf16.mxu0 %v1646
  %2175 = vmatpush1.bf16.msra.mxu0 %v1645
  %2176 = vmatprep.subr.bf16.mxu0 0
  %2177 = vmatpush1.bf16.msra.mxu0 0
  %2178 = vmatprep.subr.bf16.mxu0 0
  %2179 = vmatpush1.bf16.msra.mxu0 0
  %2180 = vmatprep.subr.bf16.mxu0 0
  %2181 = vmatpush1.bf16.msra.mxu0 0
  %2182 = vmatprep.subr.bf16.mxu0 0
  %2183 = vmatpush1.bf16.msra.mxu0 0
  %2184 = vmatprep.subr.bf16.mxu0 0
  %2185 = vmatpush1.bf16.msra.mxu0 0
  %2186 = vmatprep.subr.bf16.mxu0 0
  %2187 = vmatpush1.bf16.msra.mxu0 0
  %2188 = vmatprep.subr.bf16.mxu0 0
  %2189 = vmatpush1.bf16.msra.mxu0 0
  %2190 = vmatprep.subr.bf16.mxu0 0
  %2191 = vmatpush1.bf16.msra.mxu0 0
  %2192 = vmatprep.subr.bf16.mxu0 0
  %2193 = vmatpush1.bf16.msra.mxu0 0
  %2194 = vmatprep.subr.bf16.mxu0 0
  %2195 = vmatpush1.bf16.msra.mxu0 0
  %2196 = vmatprep.subr.bf16.mxu0 0
  %2197 = vmatpush1.bf16.msra.mxu0 0
  %2198 = vmatprep.subr.bf16.mxu0 0
  %2199 = vmatpush1.bf16.msra.mxu0 0
  %2200 = vmatprep.subr.bf16.mxu0 0
  %2201 = vmatpush1.bf16.msra.mxu0 0
  %2202 = vmatprep.mubr.bf16.mxu0 0
  %2203 = vmatmul.mubr.bf16.gmra.mrb[0].mxu0 %v1847
  %v2204 = vpop.f32.mrb[0].mxu0
  %v2205 = vadd.f32 %v2152, %v2204
  %v2206 = vpop.f32.mrb[0].mxu0
  %v2207 = vadd.f32 %v2154, %v2206
  %v2208 = vpop.f32.mrb[0].mxu0
  %v2209 = vadd.f32 %v2156, %v2208
  %v2210 = vpop.f32.mrb[0].mxu0
  %v2211 = vadd.f32 %v2158, %v2210
  %2212 = vmatprep.mubr.bf16.mxu0 0
  %2213 = vmatmul.mubr.bf16.gmra.mrb[0].mxu0 %v1850
  %v2214 = vpop.f32.mrb[0].mxu0
  %v2215 = vadd.f32 %v2162, %v2214
  %v2216 = vpop.f32.mrb[0].mxu0
  %v2217 = vadd.f32 %v2164, %v2216
  %v2218 = vpop.f32.mrb[0].mxu0
  %v2219 = vadd.f32 %v2166, %v2218
  %v2220 = vpop.f32.mrb[0].mxu0
  %v2221 = vadd.f32 %v2168, %v2220
  %2222 = vdwg.mxu0
  %v2223 = vld [vmem:[%s4] sm:$0x3]
  %v2225 = vlaneseq
  %v2226 = vshrl.u32 %v2225, 7
  %v2227 = vsub.s32 0, %v2226
  %v2228 = vrot.slane %v2223, %v2227
  %v2229 = vlaneseq
  %v2230 = vshrl.u32 %v2229, 7
  %v2231 = vsub.s32 1, %v2230
  %v2232 = vrot.slane %v2223, %v2231
  %v2235 = vadd.f32 %v2205, %v2228
  %v2236 = vadd.f32 %v2207, %v2232
  %v2237 = vadd.f32 %v2209, %v2228
  %v2238 = vadd.f32 %v2211, %v2232
  %v2239 = vadd.f32 %v2215, %v2228
  %v2240 = vadd.f32 %v2217, %v2232
  %v2241 = vadd.f32 %v2219, %v2228
  %v2242 = vadd.f32 %v2221, %v2232
  %v2243 = vmax.f32 %v2235, 0.0
  %v2244 = vmax.f32 %v2236, 0.0
  %v2245 = vmax.f32 %v2237, 0.0
  %v2246 = vmax.f32 %v2238, 0.0
  %v2247 = vmax.f32 %v2239, 0.0
  %v2248 = vmax.f32 %v2240, 0.0
  %v2249 = vmax.f32 %v2241, 0.0
  %v2250 = vmax.f32 %v2242, 0.0
  %v2251 = vld [vmem:[%s5] sm:$0x3]
  %v2253 = vlaneseq
  %v2254 = vshrl.u32 %v2253, 7
  %v2255 = vsub.s32 0, %v2254
  %v2256 = vrot.slane %v2251, %v2255
  %v2257 = vlaneseq
  %v2258 = vshrl.u32 %v2257, 7
  %v2259 = vsub.s32 1, %v2258
  %v2260 = vrot.slane %v2251, %v2259
  %v2263 = vmul.f32 %v2243, %v2256
  %v2264 = vmul.f32 %v2244, %v2260
  %v2265 = vmul.f32 %v2245, %v2256
  %v2266 = vmul.f32 %v2246, %v2260
  %v2267 = vmul.f32 %v2247, %v2256
  %v2268 = vmul.f32 %v2248, %v2260
  %v2269 = vmul.f32 %v2249, %v2256
  %v2270 = vmul.f32 %v2250, %v2260
  %v2271 = vadd.f32 %v2263, %v2264
  %2272 = vadd.xlane.f32.xlu0 %v2271
  %v2273 = vpop.xlane.xlu0 %2272
  %v2274 = vadd.f32 %v2265, %v2266
  %2275 = vadd.xlane.f32.xlu0 %v2274
  %v2276 = vpop.xlane.xlu0 %2275
  %v2277 = vadd.f32 %v2267, %v2268
  %2278 = vadd.xlane.f32.xlu0 %v2277
  %v2279 = vpop.xlane.xlu0 %2278
  %v2280 = vadd.f32 %v2269, %v2270
  %2281 = vadd.xlane.f32.xlu0 %v2280
  %v2282 = vpop.xlane.xlu0 %2281
  %v2283 = vld [vmem:[#allocation2] sm:$0x1]
  %v2285 = vlaneseq
  %v2286 = vshrl.u32 %v2285, 7
  %v2287 = vsub.s32 0, %v2286
  %v2288 = vrot.slane %v2283, %v2287
  %v2290 = vadd.f32 %v2273, %v2288
  %v2291 = vadd.f32 %v2276, %v2288
  %v2292 = vadd.f32 %v2279, %v2288
  %v2293 = vadd.f32 %v2282, %v2288
  %v2294 = vld [vmem:[%s7] sm:$0x3]
  %v2296 = vlaneseq
  %v2297 = vshrl.u32 %v2296, 7
  %v2298 = vsub.s32 0, %v2297
  %v2299 = vrot.slane %v2294, %v2298
  %v2300 = vlaneseq
  %v2301 = vshrl.u32 %v2300, 7
  %v2302 = vsub.s32 1, %v2301
  %v2303 = vrot.slane %v2294, %v2302
  %v2306 = vmul.f32 %v2243, %v2299
  %v2307 = vmul.f32 %v2244, %v2303
  %v2308 = vmul.f32 %v2245, %v2299
  %v2309 = vmul.f32 %v2246, %v2303
  %v2310 = vmul.f32 %v2247, %v2299
  %v2311 = vmul.f32 %v2248, %v2303
  %v2312 = vmul.f32 %v2249, %v2299
  %v2313 = vmul.f32 %v2250, %v2303
  %v2314 = vadd.f32 %v2306, %v2307
  %2315 = vadd.xlane.f32.xlu0 %v2314
  %v2316 = vpop.xlane.xlu0 %2315
  %v2317 = vadd.f32 %v2308, %v2309
  %2318 = vadd.xlane.f32.xlu0 %v2317
  %v2319 = vpop.xlane.xlu0 %2318
  %v2320 = vadd.f32 %v2310, %v2311
  %2321 = vadd.xlane.f32.xlu0 %v2320
  %v2322 = vpop.xlane.xlu0 %2321
  %v2323 = vadd.f32 %v2312, %v2313
  %2324 = vadd.xlane.f32.xlu0 %v2323
  %v2325 = vpop.xlane.xlu0 %2324
  %v2326 = vld [vmem:[#allocation3] sm:$0x1]
  %v2328 = vlaneseq
  %v2329 = vshrl.u32 %v2328, 7
  %v2330 = vsub.s32 0, %v2329
  %v2331 = vrot.slane %v2326, %v2330
  %v2333 = vadd.f32 %v2316, %v2331
  %v2334 = vadd.f32 %v2319, %v2331
  %v2335 = vadd.f32 %v2322, %v2331
  %v2336 = vadd.f32 %v2325, %v2331
  %v2337 = vsub.f32 0.0, %v2290
  %v2338 = vsub.f32 0.0, %v2291
  %v2339 = vsub.f32 0.0, %v2292
  %v2340 = vsub.f32 0.0, %v2293
  %v2341 = vmul.f32 %v2337, 1.442695
  %v2342 = vpow.pop %v2341
  %v2343 = vmul.f32 %v2338, 1.442695
  %v2344 = vpow.pop %v2343
  %v2345 = vmul.f32 %v2339, 1.442695
  %v2346 = vpow.pop %v2345
  %v2347 = vmul.f32 %v2340, 1.442695
  %v2348 = vpow.pop %v2347
  %v2349 = vadd.f32 %v2342, 1.0
  %v2350 = vadd.f32 %v2344, 1.0
  %v2351 = vadd.f32 %v2346, 1.0
  %v2352 = vadd.f32 %v2348, 1.0
  %v2353 = vrcp.pop %v2349
  %v2354 = vmul.f32 1.0, %v2353
  %v2355 = vrcp.pop %v2350
  %v2356 = vmul.f32 1.0, %v2355
  %v2357 = vrcp.pop %v2351
  %v2358 = vmul.f32 1.0, %v2357
  %v2359 = vrcp.pop %v2352
  %v2360 = vmul.f32 1.0, %v2359
  %v2361 = vsub.f32 0.0, %v2333
  %v2362 = vsub.f32 0.0, %v2334
  %v2363 = vsub.f32 0.0, %v2335
  %v2364 = vsub.f32 0.0, %v2336
  %v2365 = vmul.f32 %v2361, 1.442695
  %v2366 = vpow.pop %v2365
  %v2367 = vmul.f32 %v2362, 1.442695
  %v2368 = vpow.pop %v2367
  %v2369 = vmul.f32 %v2363, 1.442695
  %v2370 = vpow.pop %v2369
  %v2371 = vmul.f32 %v2364, 1.442695
  %v2372 = vpow.pop %v2371
  %v2373 = vadd.f32 %v2366, 1.0
  %v2374 = vadd.f32 %v2368, 1.0
  %v2375 = vadd.f32 %v2370, 1.0
  %v2376 = vadd.f32 %v2372, 1.0
  %v2377 = vrcp.pop %v2373
  %v2378 = vmul.f32 1.0, %v2377
  %v2379 = vrcp.pop %v2374
  %v2380 = vmul.f32 1.0, %v2379
  %v2381 = vrcp.pop %v2375
  %v2382 = vmul.f32 1.0, %v2381
  %v2383 = vrcp.pop %v2376
  %v2384 = vmul.f32 1.0, %v2383
  %v2385 = vlaneseq
  %v2386 = vand.u32 %v2385, 127
  %v2387 = vadd.s32 %v2386, 128
  %vm2388 = vcmp.eq.s32.totalorder %v2386, 152
  %vm2389 = vcmp.eq.s32.totalorder %v2387, 152
  %v2390 = vsel %vm2388, 1, 0
  %v2391 = vsel %vm2389, 1, 0
  %v2392 = vcvt.s32.f32 %v2390
  %v2393 = vcvt.s32.f32 %v2391
  %vm2394 = vcmp.eq.s32.totalorder %v2386, 153
  %vm2395 = vcmp.eq.s32.totalorder %v2387, 153
  %v2396 = vsel %vm2394, 1, 0
  %v2397 = vsel %vm2395, 1, 0
  %v2398 = vcvt.s32.f32 %v2396
  %v2399 = vcvt.s32.f32 %v2397
  %2401 = vset.pattern.permute.xlu0 0
  %2402 = vperm.xlu0 %2401, %v2354
  %v2403 = vpop.permute.xlu0 %2402
  %2406 = vset.pattern.permute.xlu0 0
  %2407 = vperm.xlu0 %2406, %v2356
  %v2408 = vpop.permute.xlu0 %2407
  %2411 = vset.pattern.permute.xlu0 0
  %2412 = vperm.xlu0 %2411, %v2358
  %v2413 = vpop.permute.xlu0 %2412
  %2416 = vset.pattern.permute.xlu0 0
  %2417 = vperm.xlu0 %2416, %v2360
  %v2418 = vpop.permute.xlu0 %2417
  %v2420 = vmul.f32 %v2403, %v2398
  %v2421 = vmul.f32 %v2403, %v2399
  %v2422 = vmul.f32 %v2408, %v2398
  %v2423 = vmul.f32 %v2408, %v2399
  %v2424 = vmul.f32 %v2413, %v2398
  %v2425 = vmul.f32 %v2413, %v2399
  %v2426 = vmul.f32 %v2418, %v2398
  %v2427 = vmul.f32 %v2418, %v2399
  %v2428 = vadd.f32 %v2392, %v2420
  %v2429 = vadd.f32 %v2393, %v2421
  %v2430 = vadd.f32 %v2392, %v2422
  %v2431 = vadd.f32 %v2393, %v2423
  %v2432 = vadd.f32 %v2392, %v2424
  %v2433 = vadd.f32 %v2393, %v2425
  %v2434 = vadd.f32 %v2392, %v2426
  %v2435 = vadd.f32 %v2393, %v2427
  %vm2436 = vcmp.eq.s32.totalorder %v2386, 154
  %vm2437 = vcmp.eq.s32.totalorder %v2387, 154
  %v2438 = vsel %vm2436, 1, 0
  %v2439 = vsel %vm2437, 1, 0
  %v2440 = vcvt.s32.f32 %v2438
  %v2441 = vcvt.s32.f32 %v2439
  %2443 = vset.pattern.permute.xlu0 0
  %2444 = vperm.xlu0 %2443, %v2378
  %v2445 = vpop.permute.xlu0 %2444
  %2448 = vset.pattern.permute.xlu0 0
  %2449 = vperm.xlu0 %2448, %v2380
  %v2450 = vpop.permute.xlu0 %2449
  %2453 = vset.pattern.permute.xlu0 0
  %2454 = vperm.xlu0 %2453, %v2382
  %v2455 = vpop.permute.xlu0 %2454
  %2458 = vset.pattern.permute.xlu0 0
  %2459 = vperm.xlu0 %2458, %v2384
  %v2460 = vpop.permute.xlu0 %2459
  %v2462 = vmul.f32 %v2445, %v2440
  %v2463 = vmul.f32 %v2445, %v2441
  %v2464 = vmul.f32 %v2450, %v2440
  %v2465 = vmul.f32 %v2450, %v2441
  %v2466 = vmul.f32 %v2455, %v2440
  %v2467 = vmul.f32 %v2455, %v2441
  %v2468 = vmul.f32 %v2460, %v2440
  %v2469 = vmul.f32 %v2460, %v2441
  %v2470 = vadd.f32 %v2428, %v2462
  %v2471 = vadd.f32 %v2429, %v2463
  %v2472 = vadd.f32 %v2430, %v2464
  %v2473 = vadd.f32 %v2431, %v2465
  %v2474 = vadd.f32 %v2432, %v2466
  %v2475 = vadd.f32 %v2433, %v2467
  %v2476 = vadd.f32 %v2434, %v2468
  %v2477 = vadd.f32 %v2435, %v2469
  %v2478 = vmul.f32 %v2205, %v2470
  %v2479 = vmul.f32 %v2207, %v2471
  %v2480 = vmul.f32 %v2209, %v2472
  %v2481 = vmul.f32 %v2211, %v2473
  %v2482 = vmul.f32 %v2215, %v2474
  %v2483 = vmul.f32 %v2217, %v2475
  %v2484 = vmul.f32 %v2219, %v2476
  %v2485 = vmul.f32 %v2221, %v2477
  %v2486 = vadd.f32 %v2478, %v2480
  %v2487 = vrot.slane %v2486, 4
  %v2488 = vadd.f32 %v2486, %v2487
  %v2489 = vrot.slane %v2488, 2
  %v2490 = vadd.f32 %v2488, %v2489
  %v2491 = vrot.slane %v2490, 1
  %v2492 = vadd.f32 %v2490, %v2491
  %v2493 = vadd.f32 %v2479, %v2481
  %v2494 = vrot.slane %v2493, 4
  %v2495 = vadd.f32 %v2493, %v2494
  %v2496 = vrot.slane %v2495, 2
  %v2497 = vadd.f32 %v2495, %v2496
  %v2498 = vrot.slane %v2497, 1
  %v2499 = vadd.f32 %v2497, %v2498
  %v2500 = vadd.f32 %v2482, %v2484
  %v2501 = vrot.slane %v2500, 4
  %v2502 = vadd.f32 %v2500, %v2501
  %v2503 = vrot.slane %v2502, 2
  %v2504 = vadd.f32 %v2502, %v2503
  %v2505 = vrot.slane %v2504, 1
  %v2506 = vadd.f32 %v2504, %v2505
  %v2507 = vadd.f32 %v2483, %v2485
  %v2508 = vrot.slane %v2507, 4
  %v2509 = vadd.f32 %v2507, %v2508
  %v2510 = vrot.slane %v2509, 2
  %v2511 = vadd.f32 %v2509, %v2510
  %v2512 = vrot.slane %v2511, 1
  %v2513 = vadd.f32 %v2511, %v2512
  %vm2518 = vcmask 1041409
  %v2519 = vsel %vm2518, %v2506, %v2492
  %v2520 = vsel %vm2518, %v2513, %v2499
  %vm2523 = vcmask 1041408
  %v2524 = vsel %vm2523, %v2519, 0.0
  %v2525 = vsel %vm2523, %v2520, 0.0
  %v2526 = vadd.f32 %v2524, %v2525
  %2527 = vadd.xlane.f32.xlu0 %v2526
  %v2528 = vpop.xlane.xlu0 %2527
  %v2529 = vmul.f32 %v2528, 0.0625
  %v2530 = vld [vmem:[#allocation4] sm:$0x1]
  %v2532 = vlaneseq
  %v2533 = vshrl.u32 %v2532, 7
  %v2534 = vsub.s32 0, %v2533
  %v2535 = vrot.slane %v2530, %v2534
  %v2537 = vadd.f32 %v2529, %v2535
  %vm2538 = vcmask 1024
  %2539 = vst.msk [vmem:[%s10] sm:$0x3] %vm2538, %v2537
  // Predicated region
  $region42: #{brain_focused_forward.1} parent=0 // pred_check
    _
  $region43: #{brain_focused_forward.1} parent=0 // pred_check_branch
    %2541 = sbr.rel (0) target = $region45
  $region44: #{brain_focused_forward.1} parent=0 // pred_region
    _
  $region45: #{brain_focused_forward.1} parent=0 // pred_fallthru
    _
  // Predicated region
  $region46: #{brain_focused_forward.1} parent=0 // pred_check
    _
  $region47: #{brain_focused_forward.1} parent=0 // pred_check_branch
    %2543 = sbr.rel (0) target = $region49
  $region48: #{brain_focused_forward.1} parent=0 // pred_region
    _
  $region49: #{brain_focused_forward.1} parent=0 // pred_fallthru
    _

</llo_original>
